<compile_context>
chip_gen: v5e
topology: v5e:2x2
jax: 0.10.0
libtpu: 0.0.40
codegen_flags: <defaults>
</compile_context>

<pallas_src>
import math

import jax
import jax.numpy as jnp
from jax import lax
from jax.experimental import pallas as pl
from jax.experimental.pallas import tpu as pltpu

# ---- model dimensions (small, consistent with the module's __init__) ----
N_TOKEN = 8      # number of learned query tokens
H = 4            # attention heads
D = 32           # model width
D_K = 8          # per-head key dim
D_V = 8          # per-head value dim
D_INNER = 64     # MLP hidden
EPS = 1e-6
TEMP = D_K ** 0.5


# ----------------------------- kernel helpers -----------------------------
def _layernorm(t, g, b):
    mu = jnp.mean(t, axis=-1, keepdims=True)
    var = jnp.mean(jnp.square(t - mu), axis=-1, keepdims=True)
    return (t - mu) * lax.rsqrt(var + EPS) * g + b


# ------------------------------ Pallas kernel ------------------------------
def transformer4_kernel(x_ref, y_ref, qs_ref, qtok_ref,
                        wq_ref, wkv_ref, wfc_ref,
                        ln1_g_ref, ln1_b_ref,
                        w1_ref, b1_ref, w2_ref, b2_ref,
                        ln2_g_ref, ln2_b_ref,
                        out_ref):
    Bb, Sa, _ = x_ref.shape
    Sb = y_ref.shape[1]
    T = qtok_ref.shape[0]

    x = x_ref[...]                       # (Bb, Sa, D)  stage-1 keys/values
    y = y_ref[...]                       # (Bb, Sb, D)  stage-2 keys/values
    q_s = qs_ref[...]                    # (T, H*Dk)    hoisted (q_tok @ q_w)/temp
    q_tok = qtok_ref[...]                # (T, D)       learned query tokens
    wq = wq_ref[...]                     # (D, H*Dk)    fused query projection
    wkv = wkv_ref[...]                   # (D, H*Dk + H*Dv)  fused K|V projection
    wfc = wfc_ref[...]                   # (H*Dv, D)    output projection
    g1, be1 = ln1_g_ref[...], ln1_b_ref[...]
    w1, bb1 = w1_ref[...], b1_ref[...]
    w2, bb2 = w2_ref[...], b2_ref[...]
    g2, be2 = ln2_g_ref[...], ln2_b_ref[...]

    def cross_attn(q_all, kv):
        """q_all: (Bb*T, H*Dk) pre-scaled queries; kv: (Bb, S, D) -> (Bb*T, D)."""
        S = kv.shape[1]
        # Fused multi-head K|V projection: one flat 2-D matmul (no per-head /
        # per-batch weight or kv replication).
        kvp = jnp.dot(kv.reshape(Bb * S, D), wkv,
                      preferred_element_type=jnp.float32)        # (Bb*S, H*(Dk+Dv))
        o_heads = []
        for h in range(H):                                       # H=4, unrolled
            q_h = q_all[:, h * D_K:(h + 1) * D_K].reshape(Bb, T, D_K)
            k_h = kvp[:, h * D_K:(h + 1) * D_K].reshape(Bb, S, D_K)
            v_h = kvp[:, H * D_K + h * D_V:
                      H * D_K + (h + 1) * D_V].reshape(Bb, S, D_V)
            s = jnp.einsum('btk,bsk->bts', q_h, k_h,
                           preferred_element_type=jnp.float32)   # (Bb, T, S)
            s = s - jnp.max(s, axis=-1, keepdims=True)
            p = jnp.exp(s)
            # reciprocal-multiply on the EUP instead of a broadcast divide.
            p = p * pl.reciprocal(jnp.sum(p, axis=-1, keepdims=True), approx=True)
            # TODO(synk): attention/output dropout omitted (eval-mode identity).
            o_heads.append(jnp.einsum('bts,bsv->btv', p, v_h,
                                      preferred_element_type=jnp.float32))
        # (Bb, T, H*Dv) via a cheap lane concat, then one fused fc matmul.
        o = jnp.concatenate(o_heads, axis=-1).reshape(Bb * T, H * D_V)
        return jnp.dot(o, wfc, preferred_element_type=jnp.float32)   # (Bb*T, D)

    # --- stage 1: crs_attn.get_query — learned query tokens attend to x ---
    q1_all = jnp.broadcast_to(q_s[None], (Bb, T, H * D_K)).reshape(Bb * T, H * D_K)
    fc1 = cross_attn(q1_all, x)                                   # (Bb*T, D)
    q_tok_rows = jnp.broadcast_to(q_tok[None], (Bb, T, D)).reshape(Bb * T, D)
    query = fc1 + q_tok_rows                                      # residual with self.q
    query1 = _layernorm(query, g1, be1)

    # --- stage 2: crs_attn.forward — normalized query attends to y ---
    q2_all = jnp.dot(query1, wq,
                     preferred_element_type=jnp.float32) * (1.0 / TEMP)
    fc2 = cross_attn(q2_all, y)                                   # (Bb*T, D)
    feat = _layernorm(fc2 + query, g1, be1)                       # shared layer_norm

    # --- stage 3: MLP on batch-flattened rows ---
    hidden = jnp.maximum(
        jnp.dot(feat, w1, preferred_element_type=jnp.float32) + bb1, 0.0)
    m = jnp.dot(hidden, w2, preferred_element_type=jnp.float32) + bb2
    out = _layernorm(m + feat, g2, be2)                           # (Bb*T, D)
    out_ref[...] = out.reshape(Bb, T, D)


# --------------------- TensorCore-aware batch blocking ---------------------
def _tensorcores_per_chip():
    try:
        kind = jax.devices()[0].device_kind.lower()
    except Exception:
        return 1
    # v7x-style chips (and v4/v5p megacore) expose 2 TensorCores per chip;
    # v5e / v6e have a single TensorCore.
    if any(tag in kind for tag in ("v7", "7x", "v4", "v5p")):
        return 2
    return 1


def _choose_n_blk(B, Sa, Sb):
    if B % 2 == 0 and _tensorcores_per_chip() >= 2:
        return 2                          # one batch block per TensorCore
    # Single-TC chip: a grid split is a serial loop.  Only block the batch
    # once per-block x/y HBM traffic is a few MiB, so BlockSpec
    # double-buffering actually hides the fetch behind compute.
    bytes_per_batch = (Sa + Sb) * D * 4
    block_target = 4 << 20                # ~4 MiB of x+y per block
    if B * bytes_per_batch < 2 * block_target:
        return 1
    n_blk = max(1, (B * bytes_per_batch) // block_target)
    n_blk = min(int(n_blk), B)
    while B % n_blk:
        n_blk -= 1
    return n_blk


# ------------------------------ host wrapper -------------------------------
def prepare_params(params):
    """One-time host-side weight prep (hoisted out of the steady-state path)."""
    (q_tok, wq, wk, wv, wfc, ln1_g, ln1_b,
     w1, b1, w2, b2, ln2_g, ln2_b) = params
    q_tok2 = q_tok[0]                                  # (T, D)
    q_s = (q_tok2 @ wq) * (1.0 / TEMP)                 # (T, H*Dk) pre-scaled q
    wkv = jnp.concatenate([wk, wv], axis=1)            # (D, H*(Dk+Dv)) fused K|V
    return (q_s, q_tok2, wq, wkv, wfc, ln1_g, ln1_b,
            w1, b1, w2, b2, ln2_g, ln2_b)


@jax.jit
def transformer4_forward(x, y, prepped):
    """x: (B, Sa, D), y: (B, Sb, D) float32 -> (B, N_TOKEN, D) float32."""
    B, Sa, _ = x.shape
    Sb = y.shape[1]

    n_blk = _choose_n_blk(B, Sa, Sb)
    Bb = B // n_blk

    def rep2(shape):
        return pl.BlockSpec(shape, lambda i: (0, 0))

    in_specs = [
        pl.BlockSpec((Bb, Sa, D), lambda i: (i, 0, 0)),   # x  (stage-1 kv source)
        pl.BlockSpec((Bb, Sb, D), lambda i: (i, 0, 0)),   # y  (stage-2 kv source)
        rep2((N_TOKEN, H * D_K)),                         # hoisted (q_tok@q_w)/temp
        rep2((N_TOKEN, D)),                               # learned query tokens
        rep2((D, H * D_K)),                               # fused q_w
        rep2((D, H * D_K + H * D_V)),                     # fused k_w|v_w
        rep2((H * D_V, D)),                               # fc
        rep2((1, D)), rep2((1, D)),                       # crs_attn layer_norm g/b
        rep2((D, D_INNER)), rep2((1, D_INNER)),           # mlp w_1 / bias
        rep2((D_INNER, D)), rep2((1, D)),                 # mlp w_2 / bias
        rep2((1, D)), rep2((1, D)),                       # mlp layer_norm g/b
    ]
    out_spec = pl.BlockSpec((Bb, N_TOKEN, D), lambda i: (i, 0, 0))

    return pl.pallas_call(
        transformer4_kernel,
        out_shape=jax.ShapeDtypeStruct((B, N_TOKEN, D), jnp.float32),
        grid_spec=pltpu.PrefetchScalarGridSpec(
            num_scalar_prefetch=0,
            grid=(n_blk,),
            in_specs=in_specs,
            out_specs=out_spec,
        ),
        compiler_params=pltpu.CompilerParams(
            dimension_semantics=("parallel",)),
    )(x, y, *prepped)


# -------------------------- parameter construction -------------------------
def init_params(key):
    ks = jax.random.split(key, 9)
    q_bound = math.sqrt(1.0 / D_K)
    q_tok = jax.random.uniform(ks[0], (1, N_TOKEN, D), jnp.float32,
                               -q_bound, q_bound)

    def lin(k, fan_in, fan_out):
        bound = math.sqrt(1.0 / fan_in)
        return jax.random.uniform(k, (fan_in, fan_out), jnp.float32,
                                  -bound, bound)

    wq = lin(ks[1], D, H * D_K)
    wk = lin(ks[2], D, H * D_K)
    wv = lin(ks[3], D, H * D_V)
    wfc = lin(ks[4], H * D_V, D)
    ln1_g = jnp.ones((1, D), jnp.float32)
    ln1_b = jnp.zeros((1, D), jnp.float32)
    w1 = lin(ks[5], D, D_INNER)
    b1 = jax.random.uniform(ks[6], (1, D_INNER), jnp.float32,
                            -math.sqrt(1.0 / D), math.sqrt(1.0 / D))
    w2 = lin(ks[7], D_INNER, D)
    b2 = jax.random.uniform(ks[8], (1, D), jnp.float32,
                            -math.sqrt(1.0 / D_INNER), math.sqrt(1.0 / D_INNER))
    ln2_g = jnp.ones((1, D), jnp.float32)
    ln2_b = jnp.zeros((1, D), jnp.float32)
    return (q_tok, wq, wk, wv, wfc, ln1_g, ln1_b,
            w1, b1, w2, b2, ln2_g, ln2_b)


# -------------------------- pure-JAX reference ------------------------------
def _ref_mha(q_in, kv_src, wq, wk, wv, wfc):
    B, T = q_in.shape[0], q_in.shape[1]
    S = kv_src.shape[1]
    q = (q_in @ wq).reshape(B, T, H, D_K).transpose(0, 2, 1, 3)
    k = (kv_src @ wk).reshape(B, S, H, D_K).transpose(0, 2, 1, 3)
    v = (kv_src @ wv).reshape(B, S, H, D_V).transpose(0, 2, 1, 3)
    s = jnp.einsum('bhtd,bhsd->bhts', q / TEMP, k)
    p = jax.nn.softmax(s, axis=-1)
    o = jnp.einsum('bhts,bhsd->bhtd', p, v)
    o = o.transpose(0, 2, 1, 3).reshape(B, T, H * D_V)
    return o @ wfc


def reference_forward(x, y, params):
    (q_tok, wq, wk, wv, wfc, ln1_g, ln1_b,
     w1, b1, w2, b2, ln2_g, ln2_b) = params
    B = x.shape[0]

    def ln(t, g, bb):
        mu = t.mean(-1, keepdims=True)
        var = ((t - mu) ** 2).mean(-1, keepdims=True)
        return (t - mu) / jnp.sqrt(var + EPS) * g.reshape(-1) + bb.reshape(-1)

    q0 = jnp.broadcast_to(q_tok, (B, N_TOKEN, D))
    fc1 = _ref_mha(q0, x, wq, wk, wv, wfc)
    query = fc1 + q_tok
    query1 = ln(query, ln1_g, ln1_b)
    fc2 = _ref_mha(query1, y, wq, wk, wv, wfc)
    h = ln(fc2 + query, ln1_g, ln1_b)
    m = jnp.maximum(h @ w1 + b1.reshape(-1), 0.0) @ w2 + b2.reshape(-1)
    return ln(m + h, ln2_g, ln2_b)


# ----------------------------------- main -----------------------------------
if __name__ == "__main__":
    key = jax.random.PRNGKey(0)
    kx, ky, kp = jax.random.split(key, 3)

    B, SEQ = 2, 16
    x = jax.random.normal(kx, (B, SEQ, D), jnp.float32)
    y = jax.random.normal(ky, (B, SEQ, D), jnp.float32)
    params = init_params(kp)
    prepped = prepare_params(params)      # one-time host-side weight prep

    out = transformer4_forward(x, y, prepped)
    out = jax.block_until_ready(out)

    ref = reference_forward(x, y, params)
    assert out.shape == (B, N_TOKEN, D), out.shape
    err = float(jnp.max(jnp.abs(out - ref)))
    # Tolerance widened slightly vs 2e-4 because the softmax normalization now
    # uses the approximate EUP reciprocal (pl.reciprocal(..., approx=True)).
    assert err < 5e-3, err
    print("KERNEL_OK")
</pallas_src>

<mosaic_0001>
module attributes {stable_mosaic.version = 11 : i64} {
  func.func @transformer4_kernel(%arg0: i32, %arg1: memref<2x16x32xf32, #tpu.memory_space<vmem>>, %arg2: memref<2x16x32xf32, #tpu.memory_space<vmem>>, %arg3: memref<8x32xf32, #tpu.memory_space<vmem>>, %arg4: memref<8x32xf32, #tpu.memory_space<vmem>>, %arg5: memref<32x32xf32, #tpu.memory_space<vmem>>, %arg6: memref<32x64xf32, #tpu.memory_space<vmem>>, %arg7: memref<32x32xf32, #tpu.memory_space<vmem>>, %arg8: memref<1x32xf32, #tpu.memory_space<vmem>>, %arg9: memref<1x32xf32, #tpu.memory_space<vmem>>, %arg10: memref<32x64xf32, #tpu.memory_space<vmem>>, %arg11: memref<1x64xf32, #tpu.memory_space<vmem>>, %arg12: memref<64x32xf32, #tpu.memory_space<vmem>>, %arg13: memref<1x32xf32, #tpu.memory_space<vmem>>, %arg14: memref<1x32xf32, #tpu.memory_space<vmem>>, %arg15: memref<1x32xf32, #tpu.memory_space<vmem>>, %arg16: memref<2x8x32xf32, #tpu.memory_space<vmem>>) attributes {dimension_semantics = [#tpu.dimension_semantics<parallel>], iteration_bounds = array<i64: 1>, scalar_prefetch = 0 : i64, scratch_operands = 0 : i64, tpu.core_type = #tpu.core_type<tc>, window_params = [{transform_indices = @transform_0, window_bounds = array<i64: 2, 16, 32>}, {transform_indices = @transform_1, window_bounds = array<i64: 2, 16, 32>}, {pipeline_mode = #tpu.pipeline_mode<synchronous>, transform_indices = @transform_2, window_bounds = array<i64: 8, 32>}, {pipeline_mode = #tpu.pipeline_mode<synchronous>, transform_indices = @transform_3, window_bounds = array<i64: 8, 32>}, {pipeline_mode = #tpu.pipeline_mode<synchronous>, transform_indices = @transform_4, window_bounds = array<i64: 32, 32>}, {pipeline_mode = #tpu.pipeline_mode<synchronous>, transform_indices = @transform_5, window_bounds = array<i64: 32, 64>}, {pipeline_mode = #tpu.pipeline_mode<synchronous>, transform_indices = @transform_6, window_bounds = array<i64: 32, 32>}, {pipeline_mode = #tpu.pipeline_mode<synchronous>, transform_indices = @transform_7, window_bounds = array<i64: 1, 32>}, {pipeline_mode = #tpu.pipeline_mode<synchronous>, transform_indices = @transform_8, window_bounds = array<i64: 1, 32>}, {pipeline_mode = #tpu.pipeline_mode<synchronous>, transform_indices = @transform_9, window_bounds = array<i64: 32, 64>}, {pipeline_mode = #tpu.pipeline_mode<synchronous>, transform_indices = @transform_10, window_bounds = array<i64: 1, 64>}, {pipeline_mode = #tpu.pipeline_mode<synchronous>, transform_indices = @transform_11, window_bounds = array<i64: 64, 32>}, {pipeline_mode = #tpu.pipeline_mode<synchronous>, transform_indices = @transform_12, window_bounds = array<i64: 1, 32>}, {pipeline_mode = #tpu.pipeline_mode<synchronous>, transform_indices = @transform_13, window_bounds = array<i64: 1, 32>}, {pipeline_mode = #tpu.pipeline_mode<synchronous>, transform_indices = @transform_14, window_bounds = array<i64: 1, 32>}, {transform_indices = @transform_15, window_bounds = array<i64: 2, 8, 32>}]} {
    %c0 = arith.constant 0 : index
    %c0_0 = arith.constant 0 : index
    %c0_1 = arith.constant 0 : index
    %0 = vector.load %arg1[%c0, %c0_0, %c0_1] : memref<2x16x32xf32, #tpu.memory_space<vmem>>, vector<2x16x32xf32>
    %c0_2 = arith.constant 0 : index
    %c0_3 = arith.constant 0 : index
    %c0_4 = arith.constant 0 : index
    %1 = vector.load %arg2[%c0_2, %c0_3, %c0_4] : memref<2x16x32xf32, #tpu.memory_space<vmem>>, vector<2x16x32xf32>
    %c0_5 = arith.constant 0 : index
    %c0_6 = arith.constant 0 : index
    %2 = vector.load %arg3[%c0_5, %c0_6] : memref<8x32xf32, #tpu.memory_space<vmem>>, vector<8x32xf32>
    %c0_7 = arith.constant 0 : index
    %c0_8 = arith.constant 0 : index
    %3 = vector.load %arg4[%c0_7, %c0_8] : memref<8x32xf32, #tpu.memory_space<vmem>>, vector<8x32xf32>
    %c0_9 = arith.constant 0 : index
    %c0_10 = arith.constant 0 : index
    %4 = vector.load %arg5[%c0_9, %c0_10] : memref<32x32xf32, #tpu.memory_space<vmem>>, vector<32x32xf32>
    %c0_11 = arith.constant 0 : index
    %c0_12 = arith.constant 0 : index
    %5 = vector.load %arg6[%c0_11, %c0_12] : memref<32x64xf32, #tpu.memory_space<vmem>>, vector<32x64xf32>
    %c0_13 = arith.constant 0 : index
    %c0_14 = arith.constant 0 : index
    %6 = vector.load %arg7[%c0_13, %c0_14] : memref<32x32xf32, #tpu.memory_space<vmem>>, vector<32x32xf32>
    %c0_15 = arith.constant 0 : index
    %c0_16 = arith.constant 0 : index
    %7 = vector.load %arg8[%c0_15, %c0_16] : memref<1x32xf32, #tpu.memory_space<vmem>>, vector<1x32xf32>
    %c0_17 = arith.constant 0 : index
    %c0_18 = arith.constant 0 : index
    %8 = vector.load %arg9[%c0_17, %c0_18] : memref<1x32xf32, #tpu.memory_space<vmem>>, vector<1x32xf32>
    %c0_19 = arith.constant 0 : index
    %c0_20 = arith.constant 0 : index
    %9 = vector.load %arg10[%c0_19, %c0_20] : memref<32x64xf32, #tpu.memory_space<vmem>>, vector<32x64xf32>
    %c0_21 = arith.constant 0 : index
    %c0_22 = arith.constant 0 : index
    %10 = vector.load %arg11[%c0_21, %c0_22] : memref<1x64xf32, #tpu.memory_space<vmem>>, vector<1x64xf32>
    %c0_23 = arith.constant 0 : index
    %c0_24 = arith.constant 0 : index
    %11 = vector.load %arg12[%c0_23, %c0_24] : memref<64x32xf32, #tpu.memory_space<vmem>>, vector<64x32xf32>
    %c0_25 = arith.constant 0 : index
    %c0_26 = arith.constant 0 : index
    %12 = vector.load %arg13[%c0_25, %c0_26] : memref<1x32xf32, #tpu.memory_space<vmem>>, vector<1x32xf32>
    %c0_27 = arith.constant 0 : index
    %c0_28 = arith.constant 0 : index
    %13 = vector.load %arg14[%c0_27, %c0_28] : memref<1x32xf32, #tpu.memory_space<vmem>>, vector<1x32xf32>
    %c0_29 = arith.constant 0 : index
    %c0_30 = arith.constant 0 : index
    %14 = vector.load %arg15[%c0_29, %c0_30] : memref<1x32xf32, #tpu.memory_space<vmem>>, vector<1x32xf32>
    %15 = vector.shape_cast %2 : vector<8x32xf32> to vector<1x8x32xf32>
    %16 = vector.shape_cast %15 : vector<1x8x32xf32> to vector<1x8x32xf32>
    %17 = vector.broadcast %16 : vector<1x8x32xf32> to vector<2x8x32xf32>
    %18 = vector.shape_cast %17 : vector<2x8x32xf32> to vector<16x32xf32>
    %19 = vector.shape_cast %0 : vector<2x16x32xf32> to vector<32x32xf32>
    %cst = arith.constant dense<0.000000e+00> : vector<32x64xf32>
    %20 = tpu.matmul %19, %5, %cst {dimension_numbers = #tpu.dot_dimension_numbers<[1], [0], [0], [1], [0, 0, 1, 1], [], []>} : vector<32x32xf32>, vector<32x64xf32>, vector<32x64xf32> -> vector<32x64xf32>
    %21 = vector.extract_strided_slice %18 {offsets = [0, 0], sizes = [16, 8], strides = [1, 1]} : vector<16x32xf32> to vector<16x8xf32>
    %22 = vector.shape_cast %21 : vector<16x8xf32> to vector<2x8x8xf32>
    %23 = vector.extract_strided_slice %20 {offsets = [0, 0], sizes = [32, 8], strides = [1, 1]} : vector<32x64xf32> to vector<32x8xf32>
    %24 = vector.shape_cast %23 : vector<32x8xf32> to vector<2x16x8xf32>
    %25 = vector.extract_strided_slice %20 {offsets = [0, 32], sizes = [32, 8], strides = [1, 1]} : vector<32x64xf32> to vector<32x8xf32>
    %26 = vector.shape_cast %25 : vector<32x8xf32> to vector<2x16x8xf32>
    "tpu.trace_start"() <{level = 10 : i32, message = "btk,bsk->bts"}> : () -> ()
    %cst_31 = arith.constant dense<0.000000e+00> : vector<2x8x16xf32>
    %27 = tpu.matmul %22, %24, %cst_31 {dimension_numbers = #tpu.dot_dimension_numbers<[2], [2], [1], [1], [0, 0, 0, 1, 1, 1], [0], [0]>} : vector<2x8x8xf32>, vector<2x16x8xf32>, vector<2x8x16xf32> -> vector<2x8x16xf32>
    "tpu.trace_stop"() : () -> ()
    %cst_32 = arith.constant dense<0xFF800000> : vector<2x8xf32>
    %28 = vector.multi_reduction <maximumf>, %27, %cst_32 [2] : vector<2x8x16xf32> to vector<2x8xf32>
    %29 = vector.shape_cast %28 : vector<2x8xf32> to vector<2x8x1xf32>
    %30 = vector.broadcast %29 : vector<2x8x1xf32> to vector<2x8x16xf32>
    %31 = arith.subf %27, %30 : vector<2x8x16xf32>
    %32 = math.exp %31 : vector<2x8x16xf32>
    %cst_33 = arith.constant dense<0.000000e+00> : vector<2x8xf32>
    %33 = vector.multi_reduction <add>, %32, %cst_33 [2] : vector<2x8x16xf32> to vector<2x8xf32>
    %34 = vector.shape_cast %33 : vector<2x8xf32> to vector<2x8x1xf32>
    %35 = tpu.reciprocal %34 {approx = true} : vector<2x8x1xf32> -> vector<2x8x1xf32>
    %36 = vector.broadcast %35 : vector<2x8x1xf32> to vector<2x8x16xf32>
    %37 = arith.mulf %32, %36 : vector<2x8x16xf32>
    "tpu.trace_start"() <{level = 10 : i32, message = "bts,bsv->btv"}> : () -> ()
    %cst_34 = arith.constant dense<0.000000e+00> : vector<2x8x8xf32>
    %38 = tpu.matmul %37, %26, %cst_34 {dimension_numbers = #tpu.dot_dimension_numbers<[2], [1], [1], [2], [0, 0, 0, 1, 1, 2], [0], [0]>} : vector<2x8x16xf32>, vector<2x16x8xf32>, vector<2x8x8xf32> -> vector<2x8x8xf32>
    "tpu.trace_stop"() : () -> ()
    %39 = vector.extract_strided_slice %18 {offsets = [0, 8], sizes = [16, 8], strides = [1, 1]} : vector<16x32xf32> to vector<16x8xf32>
    %40 = vector.shape_cast %39 : vector<16x8xf32> to vector<2x8x8xf32>
    %41 = vector.extract_strided_slice %20 {offsets = [0, 8], sizes = [32, 8], strides = [1, 1]} : vector<32x64xf32> to vector<32x8xf32>
    %42 = vector.shape_cast %41 : vector<32x8xf32> to vector<2x16x8xf32>
    %43 = vector.extract_strided_slice %20 {offsets = [0, 40], sizes = [32, 8], strides = [1, 1]} : vector<32x64xf32> to vector<32x8xf32>
    %44 = vector.shape_cast %43 : vector<32x8xf32> to vector<2x16x8xf32>
    "tpu.trace_start"() <{level = 10 : i32, message = "btk,bsk->bts"}> : () -> ()
    %cst_35 = arith.constant dense<0.000000e+00> : vector<2x8x16xf32>
    %45 = tpu.matmul %40, %42, %cst_35 {dimension_numbers = #tpu.dot_dimension_numbers<[2], [2], [1], [1], [0, 0, 0, 1, 1, 1], [0], [0]>} : vector<2x8x8xf32>, vector<2x16x8xf32>, vector<2x8x16xf32> -> vector<2x8x16xf32>
    "tpu.trace_stop"() : () -> ()
    %cst_36 = arith.constant dense<0xFF800000> : vector<2x8xf32>
    %46 = vector.multi_reduction <maximumf>, %45, %cst_36 [2] : vector<2x8x16xf32> to vector<2x8xf32>
    %47 = vector.shape_cast %46 : vector<2x8xf32> to vector<2x8x1xf32>
    %48 = vector.broadcast %47 : vector<2x8x1xf32> to vector<2x8x16xf32>
    %49 = arith.subf %45, %48 : vector<2x8x16xf32>
    %50 = math.exp %49 : vector<2x8x16xf32>
    %cst_37 = arith.constant dense<0.000000e+00> : vector<2x8xf32>
    %51 = vector.multi_reduction <add>, %50, %cst_37 [2] : vector<2x8x16xf32> to vector<2x8xf32>
    %52 = vector.shape_cast %51 : vector<2x8xf32> to vector<2x8x1xf32>
    %53 = tpu.reciprocal %52 {approx = true} : vector<2x8x1xf32> -> vector<2x8x1xf32>
    %54 = vector.broadcast %53 : vector<2x8x1xf32> to vector<2x8x16xf32>
    %55 = arith.mulf %50, %54 : vector<2x8x16xf32>
    "tpu.trace_start"() <{level = 10 : i32, message = "bts,bsv->btv"}> : () -> ()
    %cst_38 = arith.constant dense<0.000000e+00> : vector<2x8x8xf32>
    %56 = tpu.matmul %55, %44, %cst_38 {dimension_numbers = #tpu.dot_dimension_numbers<[2], [1], [1], [2], [0, 0, 0, 1, 1, 2], [0], [0]>} : vector<2x8x16xf32>, vector<2x16x8xf32>, vector<2x8x8xf32> -> vector<2x8x8xf32>
    "tpu.trace_stop"() : () -> ()
    %57 = vector.extract_strided_slice %18 {offsets = [0, 16], sizes = [16, 8], strides = [1, 1]} : vector<16x32xf32> to vector<16x8xf32>
    %58 = vector.shape_cast %57 : vector<16x8xf32> to vector<2x8x8xf32>
    %59 = vector.extract_strided_slice %20 {offsets = [0, 16], sizes = [32, 8], strides = [1, 1]} : vector<32x64xf32> to vector<32x8xf32>
    %60 = vector.shape_cast %59 : vector<32x8xf32> to vector<2x16x8xf32>
    %61 = vector.extract_strided_slice %20 {offsets = [0, 48], sizes = [32, 8], strides = [1, 1]} : vector<32x64xf32> to vector<32x8xf32>
    %62 = vector.shape_cast %61 : vector<32x8xf32> to vector<2x16x8xf32>
    "tpu.trace_start"() <{level = 10 : i32, message = "btk,bsk->bts"}> : () -> ()
    %cst_39 = arith.constant dense<0.000000e+00> : vector<2x8x16xf32>
    %63 = tpu.matmul %58, %60, %cst_39 {dimension_numbers = #tpu.dot_dimension_numbers<[2], [2], [1], [1], [0, 0, 0, 1, 1, 1], [0], [0]>} : vector<2x8x8xf32>, vector<2x16x8xf32>, vector<2x8x16xf32> -> vector<2x8x16xf32>
    "tpu.trace_stop"() : () -> ()
    %cst_40 = arith.constant dense<0xFF800000> : vector<2x8xf32>
    %64 = vector.multi_reduction <maximumf>, %63, %cst_40 [2] : vector<2x8x16xf32> to vector<2x8xf32>
    %65 = vector.shape_cast %64 : vector<2x8xf32> to vector<2x8x1xf32>
    %66 = vector.broadcast %65 : vector<2x8x1xf32> to vector<2x8x16xf32>
    %67 = arith.subf %63, %66 : vector<2x8x16xf32>
    %68 = math.exp %67 : vector<2x8x16xf32>
    %cst_41 = arith.constant dense<0.000000e+00> : vector<2x8xf32>
    %69 = vector.multi_reduction <add>, %68, %cst_41 [2] : vector<2x8x16xf32> to vector<2x8xf32>
    %70 = vector.shape_cast %69 : vector<2x8xf32> to vector<2x8x1xf32>
    %71 = tpu.reciprocal %70 {approx = true} : vector<2x8x1xf32> -> vector<2x8x1xf32>
    %72 = vector.broadcast %71 : vector<2x8x1xf32> to vector<2x8x16xf32>
    %73 = arith.mulf %68, %72 : vector<2x8x16xf32>
    "tpu.trace_start"() <{level = 10 : i32, message = "bts,bsv->btv"}> : () -> ()
    %cst_42 = arith.constant dense<0.000000e+00> : vector<2x8x8xf32>
    %74 = tpu.matmul %73, %62, %cst_42 {dimension_numbers = #tpu.dot_dimension_numbers<[2], [1], [1], [2], [0, 0, 0, 1, 1, 2], [0], [0]>} : vector<2x8x16xf32>, vector<2x16x8xf32>, vector<2x8x8xf32> -> vector<2x8x8xf32>
    "tpu.trace_stop"() : () -> ()
    %75 = vector.extract_strided_slice %18 {offsets = [0, 24], sizes = [16, 8], strides = [1, 1]} : vector<16x32xf32> to vector<16x8xf32>
    %76 = vector.shape_cast %75 : vector<16x8xf32> to vector<2x8x8xf32>
    %77 = vector.extract_strided_slice %20 {offsets = [0, 24], sizes = [32, 8], strides = [1, 1]} : vector<32x64xf32> to vector<32x8xf32>
    %78 = vector.shape_cast %77 : vector<32x8xf32> to vector<2x16x8xf32>
    %79 = vector.extract_strided_slice %20 {offsets = [0, 56], sizes = [32, 8], strides = [1, 1]} : vector<32x64xf32> to vector<32x8xf32>
    %80 = vector.shape_cast %79 : vector<32x8xf32> to vector<2x16x8xf32>
    "tpu.trace_start"() <{level = 10 : i32, message = "btk,bsk->bts"}> : () -> ()
    %cst_43 = arith.constant dense<0.000000e+00> : vector<2x8x16xf32>
    %81 = tpu.matmul %76, %78, %cst_43 {dimension_numbers = #tpu.dot_dimension_numbers<[2], [2], [1], [1], [0, 0, 0, 1, 1, 1], [0], [0]>} : vector<2x8x8xf32>, vector<2x16x8xf32>, vector<2x8x16xf32> -> vector<2x8x16xf32>
    "tpu.trace_stop"() : () -> ()
    %cst_44 = arith.constant dense<0xFF800000> : vector<2x8xf32>
    %82 = vector.multi_reduction <maximumf>, %81, %cst_44 [2] : vector<2x8x16xf32> to vector<2x8xf32>
    %83 = vector.shape_cast %82 : vector<2x8xf32> to vector<2x8x1xf32>
    %84 = vector.broadcast %83 : vector<2x8x1xf32> to vector<2x8x16xf32>
    %85 = arith.subf %81, %84 : vector<2x8x16xf32>
    %86 = math.exp %85 : vector<2x8x16xf32>
    %cst_45 = arith.constant dense<0.000000e+00> : vector<2x8xf32>
    %87 = vector.multi_reduction <add>, %86, %cst_45 [2] : vector<2x8x16xf32> to vector<2x8xf32>
    %88 = vector.shape_cast %87 : vector<2x8xf32> to vector<2x8x1xf32>
    %89 = tpu.reciprocal %88 {approx = true} : vector<2x8x1xf32> -> vector<2x8x1xf32>
    %90 = vector.broadcast %89 : vector<2x8x1xf32> to vector<2x8x16xf32>
    %91 = arith.mulf %86, %90 : vector<2x8x16xf32>
    "tpu.trace_start"() <{level = 10 : i32, message = "bts,bsv->btv"}> : () -> ()
    %cst_46 = arith.constant dense<0.000000e+00> : vector<2x8x8xf32>
    %92 = tpu.matmul %91, %80, %cst_46 {dimension_numbers = #tpu.dot_dimension_numbers<[2], [1], [1], [2], [0, 0, 0, 1, 1, 2], [0], [0]>} : vector<2x8x16xf32>, vector<2x16x8xf32>, vector<2x8x8xf32> -> vector<2x8x8xf32>
    "tpu.trace_stop"() : () -> ()
    %93 = tpu.concatenate %38, %56, %74, %92 in 2 : vector<2x8x8xf32>, vector<2x8x8xf32>, vector<2x8x8xf32>, vector<2x8x8xf32> -> vector<2x8x32xf32>
    %94 = vector.shape_cast %93 : vector<2x8x32xf32> to vector<16x32xf32>
    %cst_47 = arith.constant dense<0.000000e+00> : vector<16x32xf32>
    %95 = tpu.matmul %94, %6, %cst_47 {dimension_numbers = #tpu.dot_dimension_numbers<[1], [0], [0], [1], [0, 0, 1, 1], [], []>} : vector<16x32xf32>, vector<32x32xf32>, vector<16x32xf32> -> vector<16x32xf32>
    %96 = vector.shape_cast %3 : vector<8x32xf32> to vector<1x8x32xf32>
    %97 = vector.shape_cast %96 : vector<1x8x32xf32> to vector<1x8x32xf32>
    %98 = vector.broadcast %97 : vector<1x8x32xf32> to vector<2x8x32xf32>
    %99 = vector.shape_cast %98 : vector<2x8x32xf32> to vector<16x32xf32>
    %100 = arith.addf %95, %99 : vector<16x32xf32>
    %cst_48 = arith.constant dense<0.000000e+00> : vector<16xf32>
    %101 = vector.multi_reduction <add>, %100, %cst_48 [1] : vector<16x32xf32> to vector<16xf32>
    %102 = vector.shape_cast %101 : vector<16xf32> to vector<16x1xf32>
    %cst_49 = arith.constant 3.200000e+01 : f32
    %103 = vector.broadcast %cst_49 : f32 to vector<16x1xf32>
    %104 = arith.divf %102, %103 : vector<16x1xf32>
    %105 = vector.broadcast %104 : vector<16x1xf32> to vector<16x32xf32>
    %106 = arith.subf %100, %105 : vector<16x32xf32>
    %107 = arith.mulf %106, %106 : vector<16x32xf32>
    %cst_50 = arith.constant dense<0.000000e+00> : vector<16xf32>
    %108 = vector.multi_reduction <add>, %107, %cst_50 [1] : vector<16x32xf32> to vector<16xf32>
    %109 = vector.shape_cast %108 : vector<16xf32> to vector<16x1xf32>
    %cst_51 = arith.constant 3.200000e+01 : f32
    %110 = vector.broadcast %cst_51 : f32 to vector<16x1xf32>
    %111 = arith.divf %109, %110 : vector<16x1xf32>
    %112 = vector.broadcast %104 : vector<16x1xf32> to vector<16x32xf32>
    %113 = arith.subf %100, %112 : vector<16x32xf32>
    %cst_52 = arith.constant 9.99999997E-7 : f32
    %114 = vector.broadcast %cst_52 : f32 to vector<16x1xf32>
    %115 = arith.addf %111, %114 : vector<16x1xf32>
    %116 = math.rsqrt %115 : vector<16x1xf32>
    %117 = vector.broadcast %116 : vector<16x1xf32> to vector<16x32xf32>
    %118 = arith.mulf %113, %117 : vector<16x32xf32>
    %119 = vector.broadcast %7 : vector<1x32xf32> to vector<16x32xf32>
    %120 = arith.mulf %118, %119 : vector<16x32xf32>
    %121 = vector.broadcast %8 : vector<1x32xf32> to vector<16x32xf32>
    %122 = arith.addf %120, %121 : vector<16x32xf32>
    %cst_53 = arith.constant dense<0.000000e+00> : vector<16x32xf32>
    %123 = tpu.matmul %122, %4, %cst_53 {dimension_numbers = #tpu.dot_dimension_numbers<[1], [0], [0], [1], [0, 0, 1, 1], [], []>} : vector<16x32xf32>, vector<32x32xf32>, vector<16x32xf32> -> vector<16x32xf32>
    %cst_54 = arith.constant 0.353553385 : f32
    %124 = vector.broadcast %cst_54 : f32 to vector<16x32xf32>
    %125 = arith.mulf %123, %124 : vector<16x32xf32>
    %126 = vector.shape_cast %1 : vector<2x16x32xf32> to vector<32x32xf32>
    %cst_55 = arith.constant dense<0.000000e+00> : vector<32x64xf32>
    %127 = tpu.matmul %126, %5, %cst_55 {dimension_numbers = #tpu.dot_dimension_numbers<[1], [0], [0], [1], [0, 0, 1, 1], [], []>} : vector<32x32xf32>, vector<32x64xf32>, vector<32x64xf32> -> vector<32x64xf32>
    %128 = vector.extract_strided_slice %125 {offsets = [0, 0], sizes = [16, 8], strides = [1, 1]} : vector<16x32xf32> to vector<16x8xf32>
    %129 = vector.shape_cast %128 : vector<16x8xf32> to vector<2x8x8xf32>
    %130 = vector.extract_strided_slice %127 {offsets = [0, 0], sizes = [32, 8], strides = [1, 1]} : vector<32x64xf32> to vector<32x8xf32>
    %131 = vector.shape_cast %130 : vector<32x8xf32> to vector<2x16x8xf32>
    %132 = vector.extract_strided_slice %127 {offsets = [0, 32], sizes = [32, 8], strides = [1, 1]} : vector<32x64xf32> to vector<32x8xf32>
    %133 = vector.shape_cast %132 : vector<32x8xf32> to vector<2x16x8xf32>
    "tpu.trace_start"() <{level = 10 : i32, message = "btk,bsk->bts"}> : () -> ()
    %cst_56 = arith.constant dense<0.000000e+00> : vector<2x8x16xf32>
    %134 = tpu.matmul %129, %131, %cst_56 {dimension_numbers = #tpu.dot_dimension_numbers<[2], [2], [1], [1], [0, 0, 0, 1, 1, 1], [0], [0]>} : vector<2x8x8xf32>, vector<2x16x8xf32>, vector<2x8x16xf32> -> vector<2x8x16xf32>
    "tpu.trace_stop"() : () -> ()
    %cst_57 = arith.constant dense<0xFF800000> : vector<2x8xf32>
    %135 = vector.multi_reduction <maximumf>, %134, %cst_57 [2] : vector<2x8x16xf32> to vector<2x8xf32>
    %136 = vector.shape_cast %135 : vector<2x8xf32> to vector<2x8x1xf32>
    %137 = vector.broadcast %136 : vector<2x8x1xf32> to vector<2x8x16xf32>
    %138 = arith.subf %134, %137 : vector<2x8x16xf32>
    %139 = math.exp %138 : vector<2x8x16xf32>
    %cst_58 = arith.constant dense<0.000000e+00> : vector<2x8xf32>
    %140 = vector.multi_reduction <add>, %139, %cst_58 [2] : vector<2x8x16xf32> to vector<2x8xf32>
    %141 = vector.shape_cast %140 : vector<2x8xf32> to vector<2x8x1xf32>
    %142 = tpu.reciprocal %141 {approx = true} : vector<2x8x1xf32> -> vector<2x8x1xf32>
    %143 = vector.broadcast %142 : vector<2x8x1xf32> to vector<2x8x16xf32>
    %144 = arith.mulf %139, %143 : vector<2x8x16xf32>
    "tpu.trace_start"() <{level = 10 : i32, message = "bts,bsv->btv"}> : () -> ()
    %cst_59 = arith.constant dense<0.000000e+00> : vector<2x8x8xf32>
    %145 = tpu.matmul %144, %133, %cst_59 {dimension_numbers = #tpu.dot_dimension_numbers<[2], [1], [1], [2], [0, 0, 0, 1, 1, 2], [0], [0]>} : vector<2x8x16xf32>, vector<2x16x8xf32>, vector<2x8x8xf32> -> vector<2x8x8xf32>
    "tpu.trace_stop"() : () -> ()
    %146 = vector.extract_strided_slice %125 {offsets = [0, 8], sizes = [16, 8], strides = [1, 1]} : vector<16x32xf32> to vector<16x8xf32>
    %147 = vector.shape_cast %146 : vector<16x8xf32> to vector<2x8x8xf32>
    %148 = vector.extract_strided_slice %127 {offsets = [0, 8], sizes = [32, 8], strides = [1, 1]} : vector<32x64xf32> to vector<32x8xf32>
    %149 = vector.shape_cast %148 : vector<32x8xf32> to vector<2x16x8xf32>
    %150 = vector.extract_strided_slice %127 {offsets = [0, 40], sizes = [32, 8], strides = [1, 1]} : vector<32x64xf32> to vector<32x8xf32>
    %151 = vector.shape_cast %150 : vector<32x8xf32> to vector<2x16x8xf32>
    "tpu.trace_start"() <{level = 10 : i32, message = "btk,bsk->bts"}> : () -> ()
    %cst_60 = arith.constant dense<0.000000e+00> : vector<2x8x16xf32>
    %152 = tpu.matmul %147, %149, %cst_60 {dimension_numbers = #tpu.dot_dimension_numbers<[2], [2], [1], [1], [0, 0, 0, 1, 1, 1], [0], [0]>} : vector<2x8x8xf32>, vector<2x16x8xf32>, vector<2x8x16xf32> -> vector<2x8x16xf32>
    "tpu.trace_stop"() : () -> ()
    %cst_61 = arith.constant dense<0xFF800000> : vector<2x8xf32>
    %153 = vector.multi_reduction <maximumf>, %152, %cst_61 [2] : vector<2x8x16xf32> to vector<2x8xf32>
    %154 = vector.shape_cast %153 : vector<2x8xf32> to vector<2x8x1xf32>
    %155 = vector.broadcast %154 : vector<2x8x1xf32> to vector<2x8x16xf32>
    %156 = arith.subf %152, %155 : vector<2x8x16xf32>
    %157 = math.exp %156 : vector<2x8x16xf32>
    %cst_62 = arith.constant dense<0.000000e+00> : vector<2x8xf32>
    %158 = vector.multi_reduction <add>, %157, %cst_62 [2] : vector<2x8x16xf32> to vector<2x8xf32>
    %159 = vector.shape_cast %158 : vector<2x8xf32> to vector<2x8x1xf32>
    %160 = tpu.reciprocal %159 {approx = true} : vector<2x8x1xf32> -> vector<2x8x1xf32>
    %161 = vector.broadcast %160 : vector<2x8x1xf32> to vector<2x8x16xf32>
    %162 = arith.mulf %157, %161 : vector<2x8x16xf32>
    "tpu.trace_start"() <{level = 10 : i32, message = "bts,bsv->btv"}> : () -> ()
    %cst_63 = arith.constant dense<0.000000e+00> : vector<2x8x8xf32>
    %163 = tpu.matmul %162, %151, %cst_63 {dimension_numbers = #tpu.dot_dimension_numbers<[2], [1], [1], [2], [0, 0, 0, 1, 1, 2], [0], [0]>} : vector<2x8x16xf32>, vector<2x16x8xf32>, vector<2x8x8xf32> -> vector<2x8x8xf32>
    "tpu.trace_stop"() : () -> ()
    %164 = vector.extract_strided_slice %125 {offsets = [0, 16], sizes = [16, 8], strides = [1, 1]} : vector<16x32xf32> to vector<16x8xf32>
    %165 = vector.shape_cast %164 : vector<16x8xf32> to vector<2x8x8xf32>
    %166 = vector.extract_strided_slice %127 {offsets = [0, 16], sizes = [32, 8], strides = [1, 1]} : vector<32x64xf32> to vector<32x8xf32>
    %167 = vector.shape_cast %166 : vector<32x8xf32> to vector<2x16x8xf32>
    %168 = vector.extract_strided_slice %127 {offsets = [0, 48], sizes = [32, 8], strides = [1, 1]} : vector<32x64xf32> to vector<32x8xf32>
    %169 = vector.shape_cast %168 : vector<32x8xf32> to vector<2x16x8xf32>
    "tpu.trace_start"() <{level = 10 : i32, message = "btk,bsk->bts"}> : () -> ()
    %cst_64 = arith.constant dense<0.000000e+00> : vector<2x8x16xf32>
    %170 = tpu.matmul %165, %167, %cst_64 {dimension_numbers = #tpu.dot_dimension_numbers<[2], [2], [1], [1], [0, 0, 0, 1, 1, 1], [0], [0]>} : vector<2x8x8xf32>, vector<2x16x8xf32>, vector<2x8x16xf32> -> vector<2x8x16xf32>
    "tpu.trace_stop"() : () -> ()
    %cst_65 = arith.constant dense<0xFF800000> : vector<2x8xf32>
    %171 = vector.multi_reduction <maximumf>, %170, %cst_65 [2] : vector<2x8x16xf32> to vector<2x8xf32>
    %172 = vector.shape_cast %171 : vector<2x8xf32> to vector<2x8x1xf32>
    %173 = vector.broadcast %172 : vector<2x8x1xf32> to vector<2x8x16xf32>
    %174 = arith.subf %170, %173 : vector<2x8x16xf32>
    %175 = math.exp %174 : vector<2x8x16xf32>
    %cst_66 = arith.constant dense<0.000000e+00> : vector<2x8xf32>
    %176 = vector.multi_reduction <add>, %175, %cst_66 [2] : vector<2x8x16xf32> to vector<2x8xf32>
    %177 = vector.shape_cast %176 : vector<2x8xf32> to vector<2x8x1xf32>
    %178 = tpu.reciprocal %177 {approx = true} : vector<2x8x1xf32> -> vector<2x8x1xf32>
    %179 = vector.broadcast %178 : vector<2x8x1xf32> to vector<2x8x16xf32>
    %180 = arith.mulf %175, %179 : vector<2x8x16xf32>
    "tpu.trace_start"() <{level = 10 : i32, message = "bts,bsv->btv"}> : () -> ()
    %cst_67 = arith.constant dense<0.000000e+00> : vector<2x8x8xf32>
    %181 = tpu.matmul %180, %169, %cst_67 {dimension_numbers = #tpu.dot_dimension_numbers<[2], [1], [1], [2], [0, 0, 0, 1, 1, 2], [0], [0]>} : vector<2x8x16xf32>, vector<2x16x8xf32>, vector<2x8x8xf32> -> vector<2x8x8xf32>
    "tpu.trace_stop"() : () -> ()
    %182 = vector.extract_strided_slice %125 {offsets = [0, 24], sizes = [16, 8], strides = [1, 1]} : vector<16x32xf32> to vector<16x8xf32>
    %183 = vector.shape_cast %182 : vector<16x8xf32> to vector<2x8x8xf32>
    %184 = vector.extract_strided_slice %127 {offsets = [0, 24], sizes = [32, 8], strides = [1, 1]} : vector<32x64xf32> to vector<32x8xf32>
    %185 = vector.shape_cast %184 : vector<32x8xf32> to vector<2x16x8xf32>
    %186 = vector.extract_strided_slice %127 {offsets = [0, 56], sizes = [32, 8], strides = [1, 1]} : vector<32x64xf32> to vector<32x8xf32>
    %187 = vector.shape_cast %186 : vector<32x8xf32> to vector<2x16x8xf32>
    "tpu.trace_start"() <{level = 10 : i32, message = "btk,bsk->bts"}> : () -> ()
    %cst_68 = arith.constant dense<0.000000e+00> : vector<2x8x16xf32>
    %188 = tpu.matmul %183, %185, %cst_68 {dimension_numbers = #tpu.dot_dimension_numbers<[2], [2], [1], [1], [0, 0, 0, 1, 1, 1], [0], [0]>} : vector<2x8x8xf32>, vector<2x16x8xf32>, vector<2x8x16xf32> -> vector<2x8x16xf32>
    "tpu.trace_stop"() : () -> ()
    %cst_69 = arith.constant dense<0xFF800000> : vector<2x8xf32>
    %189 = vector.multi_reduction <maximumf>, %188, %cst_69 [2] : vector<2x8x16xf32> to vector<2x8xf32>
    %190 = vector.shape_cast %189 : vector<2x8xf32> to vector<2x8x1xf32>
    %191 = vector.broadcast %190 : vector<2x8x1xf32> to vector<2x8x16xf32>
    %192 = arith.subf %188, %191 : vector<2x8x16xf32>
    %193 = math.exp %192 : vector<2x8x16xf32>
    %cst_70 = arith.constant dense<0.000000e+00> : vector<2x8xf32>
    %194 = vector.multi_reduction <add>, %193, %cst_70 [2] : vector<2x8x16xf32> to vector<2x8xf32>
    %195 = vector.shape_cast %194 : vector<2x8xf32> to vector<2x8x1xf32>
    %196 = tpu.reciprocal %195 {approx = true} : vector<2x8x1xf32> -> vector<2x8x1xf32>
    %197 = vector.broadcast %196 : vector<2x8x1xf32> to vector<2x8x16xf32>
    %198 = arith.mulf %193, %197 : vector<2x8x16xf32>
    "tpu.trace_start"() <{level = 10 : i32, message = "bts,bsv->btv"}> : () -> ()
    %cst_71 = arith.constant dense<0.000000e+00> : vector<2x8x8xf32>
    %199 = tpu.matmul %198, %187, %cst_71 {dimension_numbers = #tpu.dot_dimension_numbers<[2], [1], [1], [2], [0, 0, 0, 1, 1, 2], [0], [0]>} : vector<2x8x16xf32>, vector<2x16x8xf32>, vector<2x8x8xf32> -> vector<2x8x8xf32>
    "tpu.trace_stop"() : () -> ()
    %200 = tpu.concatenate %145, %163, %181, %199 in 2 : vector<2x8x8xf32>, vector<2x8x8xf32>, vector<2x8x8xf32>, vector<2x8x8xf32> -> vector<2x8x32xf32>
    %201 = vector.shape_cast %200 : vector<2x8x32xf32> to vector<16x32xf32>
    %cst_72 = arith.constant dense<0.000000e+00> : vector<16x32xf32>
    %202 = tpu.matmul %201, %6, %cst_72 {dimension_numbers = #tpu.dot_dimension_numbers<[1], [0], [0], [1], [0, 0, 1, 1], [], []>} : vector<16x32xf32>, vector<32x32xf32>, vector<16x32xf32> -> vector<16x32xf32>
    %203 = arith.addf %202, %100 : vector<16x32xf32>
    %cst_73 = arith.constant dense<0.000000e+00> : vector<16xf32>
    %204 = vector.multi_reduction <add>, %203, %cst_73 [1] : vector<16x32xf32> to vector<16xf32>
    %205 = vector.shape_cast %204 : vector<16xf32> to vector<16x1xf32>
    %cst_74 = arith.constant 3.200000e+01 : f32
    %206 = vector.broadcast %cst_74 : f32 to vector<16x1xf32>
    %207 = arith.divf %205, %206 : vector<16x1xf32>
    %208 = vector.broadcast %207 : vector<16x1xf32> to vector<16x32xf32>
    %209 = arith.subf %203, %208 : vector<16x32xf32>
    %210 = arith.mulf %209, %209 : vector<16x32xf32>
    %cst_75 = arith.constant dense<0.000000e+00> : vector<16xf32>
    %211 = vector.multi_reduction <add>, %210, %cst_75 [1] : vector<16x32xf32> to vector<16xf32>
    %212 = vector.shape_cast %211 : vector<16xf32> to vector<16x1xf32>
    %cst_76 = arith.constant 3.200000e+01 : f32
    %213 = vector.broadcast %cst_76 : f32 to vector<16x1xf32>
    %214 = arith.divf %212, %213 : vector<16x1xf32>
    %215 = vector.broadcast %207 : vector<16x1xf32> to vector<16x32xf32>
    %216 = arith.subf %203, %215 : vector<16x32xf32>
    %cst_77 = arith.constant 9.99999997E-7 : f32
    %217 = vector.broadcast %cst_77 : f32 to vector<16x1xf32>
    %218 = arith.addf %214, %217 : vector<16x1xf32>
    %219 = math.rsqrt %218 : vector<16x1xf32>
    %220 = vector.broadcast %219 : vector<16x1xf32> to vector<16x32xf32>
    %221 = arith.mulf %216, %220 : vector<16x32xf32>
    %222 = vector.broadcast %7 : vector<1x32xf32> to vector<16x32xf32>
    %223 = arith.mulf %221, %222 : vector<16x32xf32>
    %224 = vector.broadcast %8 : vector<1x32xf32> to vector<16x32xf32>
    %225 = arith.addf %223, %224 : vector<16x32xf32>
    %cst_78 = arith.constant dense<0.000000e+00> : vector<16x64xf32>
    %226 = tpu.matmul %225, %9, %cst_78 {dimension_numbers = #tpu.dot_dimension_numbers<[1], [0], [0], [1], [0, 0, 1, 1], [], []>} : vector<16x32xf32>, vector<32x64xf32>, vector<16x64xf32> -> vector<16x64xf32>
    %227 = vector.broadcast %10 : vector<1x64xf32> to vector<16x64xf32>
    %228 = arith.addf %226, %227 : vector<16x64xf32>
    %cst_79 = arith.constant 0.000000e+00 : f32
    %229 = vector.broadcast %cst_79 : f32 to vector<16x64xf32>
    %230 = arith.maximumf %228, %229 : vector<16x64xf32>
    %cst_80 = arith.constant dense<0.000000e+00> : vector<16x32xf32>
    %231 = tpu.matmul %230, %11, %cst_80 {dimension_numbers = #tpu.dot_dimension_numbers<[1], [0], [0], [1], [0, 0, 1, 1], [], []>} : vector<16x64xf32>, vector<64x32xf32>, vector<16x32xf32> -> vector<16x32xf32>
    %232 = vector.broadcast %12 : vector<1x32xf32> to vector<16x32xf32>
    %233 = arith.addf %231, %232 : vector<16x32xf32>
    %234 = arith.addf %233, %225 : vector<16x32xf32>
    %cst_81 = arith.constant dense<0.000000e+00> : vector<16xf32>
    %235 = vector.multi_reduction <add>, %234, %cst_81 [1] : vector<16x32xf32> to vector<16xf32>
    %236 = vector.shape_cast %235 : vector<16xf32> to vector<16x1xf32>
    %cst_82 = arith.constant 3.200000e+01 : f32
    %237 = vector.broadcast %cst_82 : f32 to vector<16x1xf32>
    %238 = arith.divf %236, %237 : vector<16x1xf32>
    %239 = vector.broadcast %238 : vector<16x1xf32> to vector<16x32xf32>
    %240 = arith.subf %234, %239 : vector<16x32xf32>
    %241 = arith.mulf %240, %240 : vector<16x32xf32>
    %cst_83 = arith.constant dense<0.000000e+00> : vector<16xf32>
    %242 = vector.multi_reduction <add>, %241, %cst_83 [1] : vector<16x32xf32> to vector<16xf32>
    %243 = vector.shape_cast %242 : vector<16xf32> to vector<16x1xf32>
    %cst_84 = arith.constant 3.200000e+01 : f32
    %244 = vector.broadcast %cst_84 : f32 to vector<16x1xf32>
    %245 = arith.divf %243, %244 : vector<16x1xf32>
    %246 = vector.broadcast %238 : vector<16x1xf32> to vector<16x32xf32>
    %247 = arith.subf %234, %246 : vector<16x32xf32>
    %cst_85 = arith.constant 9.99999997E-7 : f32
    %248 = vector.broadcast %cst_85 : f32 to vector<16x1xf32>
    %249 = arith.addf %245, %248 : vector<16x1xf32>
    %250 = math.rsqrt %249 : vector<16x1xf32>
    %251 = vector.broadcast %250 : vector<16x1xf32> to vector<16x32xf32>
    %252 = arith.mulf %247, %251 : vector<16x32xf32>
    %253 = vector.broadcast %13 : vector<1x32xf32> to vector<16x32xf32>
    %254 = arith.mulf %252, %253 : vector<16x32xf32>
    %255 = vector.broadcast %14 : vector<1x32xf32> to vector<16x32xf32>
    %256 = arith.addf %254, %255 : vector<16x32xf32>
    %257 = vector.shape_cast %256 : vector<16x32xf32> to vector<2x8x32xf32>
    %c0_86 = arith.constant 0 : index
    %c0_87 = arith.constant 0 : index
    %c0_88 = arith.constant 0 : index
    %258 = vector.load %arg16[%c0_86, %c0_87, %c0_88] : memref<2x8x32xf32, #tpu.memory_space<vmem>>, vector<2x8x32xf32>
    tpu.vector_store %arg16[%c0_86, %c0_87, %c0_88], %257 {strides = array<i32>} : memref<2x8x32xf32, #tpu.memory_space<vmem>>, vector<2x8x32xf32>,
    return
  }
  func.func @transform_0(%arg0: i32) -> (i32, i32, i32) {
    %c0_i32 = arith.constant 0 : i32
    %c0_i32_0 = arith.constant 0 : i32
    %c0_i32_1 = arith.constant 0 : i32
    return %arg0, %c0_i32, %c0_i32_0 : i32, i32, i32
  }
  func.func @transform_1(%arg0: i32) -> (i32, i32, i32) {
    %c0_i32 = arith.constant 0 : i32
    %c0_i32_0 = arith.constant 0 : i32
    %c0_i32_1 = arith.constant 0 : i32
    return %arg0, %c0_i32, %c0_i32_0 : i32, i32, i32
  }
  func.func @transform_2(%arg0: i32) -> (i32, i32) {
    %c0_i32 = arith.constant 0 : i32
    %c0_i32_0 = arith.constant 0 : i32
    %c0_i32_1 = arith.constant 0 : i32
    return %c0_i32, %c0_i32_0 : i32, i32
  }
  func.func @transform_3(%arg0: i32) -> (i32, i32) {
    %c0_i32 = arith.constant 0 : i32
    %c0_i32_0 = arith.constant 0 : i32
    %c0_i32_1 = arith.constant 0 : i32
    return %c0_i32, %c0_i32_0 : i32, i32
  }
  func.func @transform_4(%arg0: i32) -> (i32, i32) {
    %c0_i32 = arith.constant 0 : i32
    %c0_i32_0 = arith.constant 0 : i32
    %c0_i32_1 = arith.constant 0 : i32
    return %c0_i32, %c0_i32_0 : i32, i32
  }
  func.func @transform_5(%arg0: i32) -> (i32, i32) {
    %c0_i32 = arith.constant 0 : i32
    %c0_i32_0 = arith.constant 0 : i32
    %c0_i32_1 = arith.constant 0 : i32
    return %c0_i32, %c0_i32_0 : i32, i32
  }
  func.func @transform_6(%arg0: i32) -> (i32, i32) {
    %c0_i32 = arith.constant 0 : i32
    %c0_i32_0 = arith.constant 0 : i32
    %c0_i32_1 = arith.constant 0 : i32
    return %c0_i32, %c0_i32_0 : i32, i32
  }
  func.func @transform_7(%arg0: i32) -> (i32, i32) {
    %c0_i32 = arith.constant 0 : i32
    %c0_i32_0 = arith.constant 0 : i32
    %c0_i32_1 = arith.constant 0 : i32
    return %c0_i32, %c0_i32_0 : i32, i32
  }
  func.func @transform_8(%arg0: i32) -> (i32, i32) {
    %c0_i32 = arith.constant 0 : i32
    %c0_i32_0 = arith.constant 0 : i32
    %c0_i32_1 = arith.constant 0 : i32
    return %c0_i32, %c0_i32_0 : i32, i32
  }
  func.func @transform_9(%arg0: i32) -> (i32, i32) {
    %c0_i32 = arith.constant 0 : i32
    %c0_i32_0 = arith.constant 0 : i32
    %c0_i32_1 = arith.constant 0 : i32
    return %c0_i32, %c0_i32_0 : i32, i32
  }
  func.func @transform_10(%arg0: i32) -> (i32, i32) {
    %c0_i32 = arith.constant 0 : i32
    %c0_i32_0 = arith.constant 0 : i32
    %c0_i32_1 = arith.constant 0 : i32
    return %c0_i32, %c0_i32_0 : i32, i32
  }
  func.func @transform_11(%arg0: i32) -> (i32, i32) {
    %c0_i32 = arith.constant 0 : i32
    %c0_i32_0 = arith.constant 0 : i32
    %c0_i32_1 = arith.constant 0 : i32
    return %c0_i32, %c0_i32_0 : i32, i32
  }
  func.func @transform_12(%arg0: i32) -> (i32, i32) {
    %c0_i32 = arith.constant 0 : i32
    %c0_i32_0 = arith.constant 0 : i32
    %c0_i32_1 = arith.constant 0 : i32
    return %c0_i32, %c0_i32_0 : i32, i32
  }
  func.func @transform_13(%arg0: i32) -> (i32, i32) {
    %c0_i32 = arith.constant 0 : i32
    %c0_i32_0 = arith.constant 0 : i32
    %c0_i32_1 = arith.constant 0 : i32
    return %c0_i32, %c0_i32_0 : i32, i32
  }
  func.func @transform_14(%arg0: i32) -> (i32, i32) {
    %c0_i32 = arith.constant 0 : i32
    %c0_i32_0 = arith.constant 0 : i32
    %c0_i32_1 = arith.constant 0 : i32
    return %c0_i32, %c0_i32_0 : i32, i32
  }
  func.func @transform_15(%arg0: i32) -> (i32, i32, i32) {
    %c0_i32 = arith.constant 0 : i32
    %c0_i32_0 = arith.constant 0 : i32
    %c0_i32_1 = arith.constant 0 : i32
    return %arg0, %c0_i32, %c0_i32_0 : i32, i32, i32
  }
}

</mosaic_0001>

<llo_original>
// kernel: transformer4_forward.1
$region0: #{transformer4_forward.1}
  #allocation0 [shape = 'u32[]', space=smem, size = 0x4, offset = 0x4, fixed_abs, tag = 'smem constant byte address 0x4 - core index']
  #allocation1 [shape = 'u32[72,128]{1,0:T(1,128)}', space=vmem, size = 0x9000, scoped, tag = 'internal scratch']
  %s0 = inlined_call_operand.vmem [shape: f32[2,16,32], index: 0, kind: input, shape index: {}]
  %s1 = inlined_call_operand.vmem [shape: f32[2,16,32], index: 1, kind: input, shape index: {}]
  %s2 = inlined_call_operand.hbm [shape: f32[8,32], index: 2, kind: input, shape index: {}]
  %s3 = inlined_call_operand.hbm [shape: f32[8,32], index: 3, kind: input, shape index: {}]
  %s4 = inlined_call_operand.vmem [shape: f32[32,32], index: 4, kind: input, shape index: {}]
  %s5 = inlined_call_operand.hbm [shape: f32[32,64], index: 5, kind: input, shape index: {}]
  %s6 = inlined_call_operand.hbm [shape: f32[32,32], index: 6, kind: input, shape index: {}]
  %s7 = inlined_call_operand.vmem [shape: f32[1,32], index: 7, kind: input, shape index: {}]
  %s8 = inlined_call_operand.vmem [shape: f32[1,32], index: 8, kind: input, shape index: {}]
  %s9 = inlined_call_operand.hbm [shape: f32[32,64], index: 9, kind: input, shape index: {}]
  %s10 = inlined_call_operand.vmem [shape: f32[1,64], index: 10, kind: input, shape index: {}]
  %s11 = inlined_call_operand.vmem [shape: f32[64,32], index: 11, kind: input, shape index: {}]
  %s12 = inlined_call_operand.vmem [shape: f32[1,32], index: 12, kind: input, shape index: {}]
  %s13 = inlined_call_operand.vmem [shape: f32[1,32], index: 13, kind: input, shape index: {}]
  %s14 = inlined_call_operand.vmem [shape: f32[1,32], index: 14, kind: input, shape index: {}]
  %s15 = inlined_call_operand.hbm [shape: f32[2,8,32], index: 15, kind: output, shape index: {}]
  %s16 = sld [smem:[#allocation0]]
  $region90: #{transformer4_forward.1} parent=0
    _
  %s18 = ssub.s32 1, %s16
  %s19 = scalar_select 0, %s18, %s16
  $region1: #{transformer4_forward.1} parent=0
    #allocation2 [shape = 'u8[4096]{0}', space=vmem, size = 0x1000, scoped, tag = 'input window, operand 2, single buffered']
    #allocation3 [shape = 's32[1]{0}', space=sflag, size = 0x4, scoped, tag = 'scoped memory for transformer4_forward.1']
    #allocation4 [shape = 's32[1]{0}', space=sflag, size = 0x4, scoped, tag = 'scoped memory for transformer4_forward.1']
    #allocation5 [shape = 'u8[4096]{0}', space=vmem, size = 0x1000, scoped, tag = 'input window, operand 3, single buffered']
    #allocation6 [shape = 's32[1]{0}', space=sflag, size = 0x4, scoped, tag = 'scoped memory for transformer4_forward.1']
    #allocation7 [shape = 'u8[16384]{0}', space=vmem, size = 0x4000, scoped, tag = 'input window, operand 5, single buffered']
    #allocation8 [shape = 'u8[16384]{0}', space=vmem, size = 0x4000, scoped, tag = 'input window, operand 6, single buffered']
    #allocation9 [shape = 's32[1]{0}', space=sflag, size = 0x4, scoped, tag = 'scoped memory for transformer4_forward.1']
    #allocation10 [shape = 'u8[16384]{0}', space=vmem, size = 0x4000, scoped, tag = 'input window, operand 9, single buffered']
    #allocation11 [shape = 'u8[8192]{0}', space=vmem, size = 0x2000, scoped, tag = 'output window, operand 0, single buffered']
    %20 = vsyncpa [#allocation3], 0
    %21 = vsyncpa [#allocation6], 0
    %22 = vsyncpa [#allocation9], 0
    %23 = vsyncpa [#allocation4], 0
    // Predicated region
    $region2: #{transformer4_forward.1} parent=1 // pred_check
      _
    $region3: #{transformer4_forward.1} parent=1 // pred_check_branch
      %25 = sbr.rel (0) target = $region5
    $region4: #{transformer4_forward.1} parent=1 // pred_region
      _
    $region5: #{transformer4_forward.1} parent=1 // pred_fallthru
      _
    // Predicated region
    $region6: #{transformer4_forward.1} parent=1 // pred_check
      _
    $region7: #{transformer4_forward.1} parent=1 // pred_check_branch
      %27 = sbr.rel (0) target = $region9
    $region8: #{transformer4_forward.1} parent=1 // pred_region
      _
    $region9: #{transformer4_forward.1} parent=1 // pred_fallthru
      _
    // Predicated region
    $region10: #{transformer4_forward.1} parent=1 // pred_check
      _
    $region11: #{transformer4_forward.1} parent=1 // pred_check_branch
      %29 = sbr.rel (0) target = $region13
    $region12: #{transformer4_forward.1} parent=1 // pred_region
      %31 = vsyncadd [#allocation3], 0
      %s33 = sshll.u32 %s2, 4
      %s34 = int_to_ptr.hbm [resolvable:$true] %s33
      %s35 = sshll.u32 [#allocation2], 4
      %s36 = int_to_ptr.vmem [resolvable:$true] %s35
      %38 = dma.hbm_to_vmem [thread:$0]  %s34, 128, %s36, [#allocation3]
    $region13: #{transformer4_forward.1} parent=1 // pred_fallthru
      _
    // Predicated region
    $region14: #{transformer4_forward.1} parent=1 // pred_check
      _
    $region15: #{transformer4_forward.1} parent=1 // pred_check_branch
      %40 = sbr.rel (0) target = $region17
    $region16: #{transformer4_forward.1} parent=1 // pred_region
      %42 = vsyncadd [#allocation6], 0
      %s44 = sshll.u32 %s3, 4
      %s45 = int_to_ptr.hbm [resolvable:$true] %s44
      %s46 = sshll.u32 [#allocation5], 4
      %s47 = int_to_ptr.vmem [resolvable:$true] %s46
      %49 = dma.hbm_to_vmem [thread:$0]  %s45, 128, %s47, [#allocation6]
    $region17: #{transformer4_forward.1} parent=1 // pred_fallthru
      _
    // Predicated region
    $region18: #{transformer4_forward.1} parent=1 // pred_check
      _
    $region19: #{transformer4_forward.1} parent=1 // pred_check_branch
      %51 = sbr.rel (0) target = $region21
    $region20: #{transformer4_forward.1} parent=1 // pred_region
      _
    $region21: #{transformer4_forward.1} parent=1 // pred_fallthru
      _
    // Predicated region
    $region22: #{transformer4_forward.1} parent=1 // pred_check
      _
    $region23: #{transformer4_forward.1} parent=1 // pred_check_branch
      %53 = sbr.rel (0) target = $region25
    $region24: #{transformer4_forward.1} parent=1 // pred_region
      %55 = vsyncadd [#allocation6], 0
      %s56 = sshll.u32 %s5, 4
      %s57 = int_to_ptr.hbm [resolvable:$true] %s56
      %s58 = sshll.u32 [#allocation7], 4
      %s59 = int_to_ptr.vmem [resolvable:$true] %s58
      %64 = dma.hbm_to_vmem [thread:$0]  %s57, 512, %s59, [#allocation6], 128, 128, 8
    $region25: #{transformer4_forward.1} parent=1 // pred_fallthru
      _
    // Predicated region
    $region26: #{transformer4_forward.1} parent=1 // pred_check
      _
    $region27: #{transformer4_forward.1} parent=1 // pred_check_branch
      %66 = sbr.rel (0) target = $region29
    $region28: #{transformer4_forward.1} parent=1 // pred_region
      %68 = vsyncadd [#allocation9], 0
      %s69 = sshll.u32 %s6, 4
      %s70 = int_to_ptr.hbm [resolvable:$true] %s69
      %s71 = sshll.u32 [#allocation8], 4
      %s72 = int_to_ptr.vmem [resolvable:$true] %s71
      %77 = dma.hbm_to_vmem [thread:$0]  %s70, 512, %s72, [#allocation9], 128, 128, 8
    $region29: #{transformer4_forward.1} parent=1 // pred_fallthru
      _
    // Predicated region
    $region30: #{transformer4_forward.1} parent=1 // pred_check
      _
    $region31: #{transformer4_forward.1} parent=1 // pred_check_branch
      %79 = sbr.rel (0) target = $region33
    $region32: #{transformer4_forward.1} parent=1 // pred_region
      _
    $region33: #{transformer4_forward.1} parent=1 // pred_fallthru
      _
    // Predicated region
    $region34: #{transformer4_forward.1} parent=1 // pred_check
      _
    $region35: #{transformer4_forward.1} parent=1 // pred_check_branch
      %81 = sbr.rel (0) target = $region37
    $region36: #{transformer4_forward.1} parent=1 // pred_region
      _
    $region37: #{transformer4_forward.1} parent=1 // pred_fallthru
      _
    // Predicated region
    $region38: #{transformer4_forward.1} parent=1 // pred_check
      _
    $region39: #{transformer4_forward.1} parent=1 // pred_check_branch
      %83 = sbr.rel (0) target = $region41
    $region40: #{transformer4_forward.1} parent=1 // pred_region
      %85 = vsyncadd [#allocation9], 0
      %s86 = sshll.u32 %s9, 4
      %s87 = int_to_ptr.hbm [resolvable:$true] %s86
      %s88 = sshll.u32 [#allocation10], 4
      %s89 = int_to_ptr.vmem [resolvable:$true] %s88
      %94 = dma.hbm_to_vmem [thread:$0]  %s87, 512, %s89, [#allocation9], 128, 128, 8
    $region41: #{transformer4_forward.1} parent=1 // pred_fallthru
      _
    // Predicated region
    $region42: #{transformer4_forward.1} parent=1 // pred_check
      _
    $region43: #{transformer4_forward.1} parent=1 // pred_check_branch
      %96 = sbr.rel (0) target = $region45
    $region44: #{transformer4_forward.1} parent=1 // pred_region
      _
    $region45: #{transformer4_forward.1} parent=1 // pred_fallthru
      _
    // Predicated region
    $region46: #{transformer4_forward.1} parent=1 // pred_check
      _
    $region47: #{transformer4_forward.1} parent=1 // pred_check_branch
      %98 = sbr.rel (0) target = $region49
    $region48: #{transformer4_forward.1} parent=1 // pred_region
      _
    $region49: #{transformer4_forward.1} parent=1 // pred_fallthru
      _
    // Predicated region
    $region50: #{transformer4_forward.1} parent=1 // pred_check
      _
    $region51: #{transformer4_forward.1} parent=1 // pred_check_branch
      %100 = sbr.rel (0) target = $region53
    $region52: #{transformer4_forward.1} parent=1 // pred_region
      _
    $region53: #{transformer4_forward.1} parent=1 // pred_fallthru
      _
    // Predicated region
    $region54: #{transformer4_forward.1} parent=1 // pred_check
      _
    $region55: #{transformer4_forward.1} parent=1 // pred_check_branch
      %102 = sbr.rel (0) target = $region57
    $region56: #{transformer4_forward.1} parent=1 // pred_region
      _
    $region57: #{transformer4_forward.1} parent=1 // pred_fallthru
      _
    // Predicated region
    $region58: #{transformer4_forward.1} parent=1 // pred_check
      _
    $region59: #{transformer4_forward.1} parent=1 // pred_check_branch
      %104 = sbr.rel (0) target = $region61
    $region60: #{transformer4_forward.1} parent=1 // pred_region
      _
    $region61: #{transformer4_forward.1} parent=1 // pred_fallthru
      _
    // Predicated region
    $region62: #{transformer4_forward.1} parent=1 // pred_check
      _
    $region63: #{transformer4_forward.1} parent=1 // pred_check_branch
      %106 = sbr.rel (0) target = $region65
    $region64: #{transformer4_forward.1} parent=1 // pred_region
      %108 = dma.done [#allocation3], 128
    $region65: #{transformer4_forward.1} parent=1 // pred_fallthru
      _
    // Predicated region
    $region66: #{transformer4_forward.1} parent=1 // pred_check
      _
    $region67: #{transformer4_forward.1} parent=1 // pred_check_branch
      %110 = sbr.rel (0) target = $region69
    $region68: #{transformer4_forward.1} parent=1 // pred_region
      %112 = dma.done [#allocation6], 128
    $region69: #{transformer4_forward.1} parent=1 // pred_fallthru
      _
    // Predicated region
    $region70: #{transformer4_forward.1} parent=1 // pred_check
      _
    $region71: #{transformer4_forward.1} parent=1 // pred_check_branch
      %114 = sbr.rel (0) target = $region73
    $region72: #{transformer4_forward.1} parent=1 // pred_region
      %116 = dma.done [#allocation6], 512
    $region73: #{transformer4_forward.1} parent=1 // pred_fallthru
      _
    // Predicated region
    $region74: #{transformer4_forward.1} parent=1 // pred_check
      _
    $region75: #{transformer4_forward.1} parent=1 // pred_check_branch
      %118 = sbr.rel (0) target = $region77
    $region76: #{transformer4_forward.1} parent=1 // pred_region
      %120 = dma.done [#allocation9], 512
    $region77: #{transformer4_forward.1} parent=1 // pred_fallthru
      _
    // Predicated region
    $region78: #{transformer4_forward.1} parent=1 // pred_check
      _
    $region79: #{transformer4_forward.1} parent=1 // pred_check_branch
      %122 = sbr.rel (0) target = $region81
    $region80: #{transformer4_forward.1} parent=1 // pred_region
      %124 = dma.done [#allocation9], 512
    $region81: #{transformer4_forward.1} parent=1 // pred_fallthru
      _
    %v125 = vld [vmem:[%s0] sm:$0xff]
    %v126 = vld [vmem:[%s0 + $0x8] sm:$0xff]
    %v127 = vld [vmem:[%s0 + $0x10] sm:$0xff]
    %v128 = vld [vmem:[%s0 + $0x18] sm:$0xff]
    %v129 = vld [vmem:[%s1] sm:$0xff]
    %v130 = vld [vmem:[%s1 + $0x8] sm:$0xff]
    %v131 = vld [vmem:[%s1 + $0x10] sm:$0xff]
    %v132 = vld [vmem:[%s1 + $0x18] sm:$0xff]
    %v133 = vld [vmem:[#allocation2] sm:$0xff]
    %v134 = vld [vmem:[#allocation5] sm:$0xff]
    %v135 = vld [vmem:[%s4] sm:$0xff]
    %v136 = vld [vmem:[%s4 + $0x8] sm:$0xff]
    %v137 = vld [vmem:[%s4 + $0x10] sm:$0xff]
    %v138 = vld [vmem:[%s4 + $0x18] sm:$0xff]
    %v139 = vld [vmem:[#allocation7] sm:$0xff]
    %v140 = vld [vmem:[#allocation7 + $0x8] sm:$0xff]
    %v141 = vld [vmem:[#allocation7 + $0x10] sm:$0xff]
    %v142 = vld [vmem:[#allocation7 + $0x18] sm:$0xff]
    %v143 = vld [vmem:[#allocation8] sm:$0xff]
    %v144 = vld [vmem:[#allocation8 + $0x8] sm:$0xff]
    %v145 = vld [vmem:[#allocation8 + $0x10] sm:$0xff]
    %v146 = vld [vmem:[#allocation8 + $0x18] sm:$0xff]
    %v147 = vld [vmem:[%s7] sm:$0x1]
    %v148 = vld [vmem:[%s8] sm:$0x1]
    %v149 = vld [vmem:[#allocation10] sm:$0xff]
    %v150 = vld [vmem:[#allocation10 + $0x8] sm:$0xff]
    %v151 = vld [vmem:[#allocation10 + $0x10] sm:$0xff]
    %v152 = vld [vmem:[#allocation10 + $0x18] sm:$0xff]
    %v153 = vld [vmem:[%s10] sm:$0x1]
    %v154 = vld [vmem:[%s11] sm:$0xff]
    %v155 = vld [vmem:[%s11 + $0x8] sm:$0xff]
    %v156 = vld [vmem:[%s11 + $0x10] sm:$0xff]
    %v157 = vld [vmem:[%s11 + $0x18] sm:$0xff]
    %v158 = vld [vmem:[%s11 + $0x20] sm:$0xff]
    %v159 = vld [vmem:[%s11 + $0x28] sm:$0xff]
    %v160 = vld [vmem:[%s11 + $0x30] sm:$0xff]
    %v161 = vld [vmem:[%s11 + $0x38] sm:$0xff]
    %v162 = vld [vmem:[%s12] sm:$0x1]
    %v163 = vld [vmem:[%s13] sm:$0x1]
    %v164 = vld [vmem:[%s14] sm:$0x1]
    %vm165 = vcmask 261120
    %v167 = vsel %vm165, %v125, 0
    %v170 = vsel %vm165, %v126, 0
    %v173 = vsel %vm165, %v127, 0
    %v176 = vsel %vm165, %v128, 0
    %178 = vmatpush.msra.mxu0 0.0
    %179 = vmatpush.msra.mxu0 0.0
    %180 = vmatpush.msra.mxu0 0.0
    %181 = vmatpush.msra.mxu0 0.0
    %182 = vmatpush.msra.mxu0 0.0
    %183 = vmatpush.msra.mxu0 0.0
    %184 = vmatpush.msra.mxu0 0.0
    %185 = vmatpush.msra.mxu0 0.0
    %186 = vmatpush.msra.mxu0 0.0
    %187 = vmatpush.msra.mxu0 0.0
    %188 = vmatpush.msra.mxu0 0.0
    %189 = vmatpush.msra.mxu0 0.0
    %190 = vmatpush.msra.mxu0 %v142
    %191 = vmatpush.msra.mxu0 %v141
    %192 = vmatpush.msra.mxu0 %v140
    %193 = vmatpush.msra.mxu0 %v139
    %194 = vmatmul.f32.gmra.mxu0 %v167
    %v195 = vpop.f32.mrf.mxu0
    %v196 = vadd.f32 0.0, %v195
    %197 = vmatmul.f32.gmra.mxu0 %v170
    %v198 = vpop.f32.mrf.mxu0
    %v199 = vadd.f32 0.0, %v198
    %200 = vmatmul.f32.gmra.mxu0 %v173
    %v201 = vpop.f32.mrf.mxu0
    %v202 = vadd.f32 0.0, %v201
    %203 = vmatmul.f32.gmra.mxu0 %v176
    %v204 = vpop.f32.mrf.mxu0
    %v205 = vadd.f32 0.0, %v204
    %206 = vdwg.mxu0
    %vm207 = vcmask 64512
    %v209 = vsel %vm207, %v133, 0
    %v212 = vsel %vm207, %v196, 0
    %v215 = vsel %vm207, %v199, 0
    %217 = vmatpush.xpose.msra.mxu0 0.0
    %218 = vmatpush.xpose.msra.mxu0 0.0
    %219 = vmatpush.xpose.msra.mxu0 0.0
    %220 = vmatpush.xpose.msra.mxu0 0.0
    %221 = vmatpush.xpose.msra.mxu0 0.0
    %222 = vmatpush.xpose.msra.mxu0 0.0
    %223 = vmatpush.xpose.msra.mxu0 0.0
    %224 = vmatpush.xpose.msra.mxu0 0.0
    %225 = vmatpush.xpose.msra.mxu0 0.0
    %226 = vmatpush.xpose.msra.mxu0 0.0
    %227 = vmatpush.xpose.msra.mxu0 0.0
    %228 = vmatpush.xpose.msra.mxu0 0.0
    %229 = vmatpush.xpose.msra.mxu0 0.0
    %230 = vmatpush.xpose.msra.mxu0 0.0
    %231 = vmatpush.xpose.msra.mxu0 %v215
    %232 = vmatpush.xpose.msra.mxu0 %v212
    %233 = vmatmul.f32.gmra.mxu0 %v209
    %v234 = vpop.f32.mrf.mxu0
    %v235 = vadd.f32 0.0, %v234
    %236 = vdwg.mxu0
    %v238 = vsel %vm207, %v202, 0
    %v241 = vsel %vm207, %v205, 0
    %243 = vmatpush.xpose.msra.mxu0 0.0
    %244 = vmatpush.xpose.msra.mxu0 0.0
    %245 = vmatpush.xpose.msra.mxu0 0.0
    %246 = vmatpush.xpose.msra.mxu0 0.0
    %247 = vmatpush.xpose.msra.mxu0 0.0
    %248 = vmatpush.xpose.msra.mxu0 0.0
    %249 = vmatpush.xpose.msra.mxu0 0.0
    %250 = vmatpush.xpose.msra.mxu0 0.0
    %251 = vmatpush.xpose.msra.mxu0 0.0
    %252 = vmatpush.xpose.msra.mxu0 0.0
    %253 = vmatpush.xpose.msra.mxu0 0.0
    %254 = vmatpush.xpose.msra.mxu0 0.0
    %255 = vmatpush.xpose.msra.mxu0 0.0
    %256 = vmatpush.xpose.msra.mxu0 0.0
    %257 = vmatpush.xpose.msra.mxu0 %v241
    %258 = vmatpush.xpose.msra.mxu0 %v238
    %259 = vmatmul.f32.gmra.mxu0 %v209
    %v260 = vpop.f32.mrf.mxu0
    %v261 = vadd.f32 0.0, %v260
    %262 = vdwg.mxu0
    %vm263 = vcmask 130048
    %v264 = vsel %vm263, %v235, -inf
    %265 = vmax.xlane.f32.xlu0 %v264
    %v266 = vpop.xlane.xlu0 %265
    %v267 = vsel %vm263, %v261, -inf
    %268 = vmax.xlane.f32.xlu0 %v267
    %v269 = vpop.xlane.xlu0 %268
    %v270 = vsub.f32 %v235, %v266
    %v271 = vsub.f32 %v261, %v269
    %v272 = vmul.f32 %v270, 1.442695
    %v273 = vpow.pop %v272
    %v274 = vmul.f32 %v271, 1.442695
    %v275 = vpow.pop %v274
    %v276 = vsel %vm263, %v273, 0.0
    %277 = vadd.xlane.f32.xlu0 %v276
    %v278 = vpop.xlane.xlu0 %277
    %v279 = vsel %vm263, %v275, 0.0
    %280 = vadd.xlane.f32.xlu0 %v279
    %v281 = vpop.xlane.xlu0 %280
    %v282 = vrcp.pop %v278
    %v283 = vrcp.pop %v281
    %v284 = vmul.f32 %v273, %v282
    %v285 = vmul.f32 %v275, %v283
    %286 = vrot.lane.b32.xlu0 %v196, 96
    %v287 = vpop.permute.xlu0 %286
    %288 = vrot.lane.b32.xlu0 %v199, 96
    %v289 = vpop.permute.xlu0 %288
    %v293 = vsel %vm263, %v284, 0
    %295 = vmatpush.msra.mxu0 0.0
    %296 = vmatpush.msra.mxu0 0.0
    %297 = vmatpush.msra.mxu0 0.0
    %298 = vmatpush.msra.mxu0 0.0
    %299 = vmatpush.msra.mxu0 0.0
    %300 = vmatpush.msra.mxu0 0.0
    %301 = vmatpush.msra.mxu0 0.0
    %302 = vmatpush.msra.mxu0 0.0
    %303 = vmatpush.msra.mxu0 0.0
    %304 = vmatpush.msra.mxu0 0.0
    %305 = vmatpush.msra.mxu0 0.0
    %306 = vmatpush.msra.mxu0 0.0
    %307 = vmatpush.msra.mxu0 0.0
    %308 = vmatpush.msra.mxu0 0.0
    %309 = vmatpush.msra.mxu0 %v289
    %310 = vmatpush.msra.mxu0 %v287
    %311 = vmatmul.f32.gmra.mxu0 %v293
    %v312 = vpop.f32.mrf.mxu0
    %v313 = vadd.f32 0.0, %v312
    %314 = vdwg.mxu0
    %315 = vrot.lane.b32.xlu0 %v202, 96
    %v316 = vpop.permute.xlu0 %315
    %317 = vrot.lane.b32.xlu0 %v205, 96
    %v318 = vpop.permute.xlu0 %317
    %v322 = vsel %vm263, %v285, 0
    %324 = vmatpush.msra.mxu0 0.0
    %325 = vmatpush.msra.mxu0 0.0
    %326 = vmatpush.msra.mxu0 0.0
    %327 = vmatpush.msra.mxu0 0.0
    %328 = vmatpush.msra.mxu0 0.0
    %329 = vmatpush.msra.mxu0 0.0
    %330 = vmatpush.msra.mxu0 0.0
    %331 = vmatpush.msra.mxu0 0.0
    %332 = vmatpush.msra.mxu0 0.0
    %333 = vmatpush.msra.mxu0 0.0
    %334 = vmatpush.msra.mxu0 0.0
    %335 = vmatpush.msra.mxu0 0.0
    %336 = vmatpush.msra.mxu0 0.0
    %337 = vmatpush.msra.mxu0 0.0
    %338 = vmatpush.msra.mxu0 %v318
    %339 = vmatpush.msra.mxu0 %v316
    %340 = vmatmul.f32.gmra.mxu0 %v322
    %v341 = vpop.f32.mrf.mxu0
    %v342 = vadd.f32 0.0, %v341
    %343 = vdwg.mxu0
    %344 = vrot.lane.b32.xlu0 %v133, 120
    %v345 = vpop.permute.xlu0 %344
    %346 = vrot.lane.b32.xlu0 %v196, 120
    %v347 = vpop.permute.xlu0 %346
    %348 = vrot.lane.b32.xlu0 %v199, 120
    %v349 = vpop.permute.xlu0 %348
    %v350 = vsel %vm207, %v345, 0
    %v352 = vsel %vm207, %v347, 0
    %v354 = vsel %vm207, %v349, 0
    %356 = vmatpush.xpose.msra.mxu0 0.0
    %357 = vmatpush.xpose.msra.mxu0 0.0
    %358 = vmatpush.xpose.msra.mxu0 0.0
    %359 = vmatpush.xpose.msra.mxu0 0.0
    %360 = vmatpush.xpose.msra.mxu0 0.0
    %361 = vmatpush.xpose.msra.mxu0 0.0
    %362 = vmatpush.xpose.msra.mxu0 0.0
    %363 = vmatpush.xpose.msra.mxu0 0.0
    %364 = vmatpush.xpose.msra.mxu0 0.0
    %365 = vmatpush.xpose.msra.mxu0 0.0
    %366 = vmatpush.xpose.msra.mxu0 0.0
    %367 = vmatpush.xpose.msra.mxu0 0.0
    %368 = vmatpush.xpose.msra.mxu0 0.0
    %369 = vmatpush.xpose.msra.mxu0 0.0
    %370 = vmatpush.xpose.msra.mxu0 %v354
    %371 = vmatpush.xpose.msra.mxu0 %v352
    %372 = vmatmul.f32.gmra.mxu0 %v350
    %v373 = vpop.f32.mrf.mxu0
    %v374 = vadd.f32 0.0, %v373
    %375 = vdwg.mxu0
    %376 = vrot.lane.b32.xlu0 %v202, 120
    %v377 = vpop.permute.xlu0 %376
    %378 = vrot.lane.b32.xlu0 %v205, 120
    %v379 = vpop.permute.xlu0 %378
    %v380 = vsel %vm207, %v377, 0
    %v382 = vsel %vm207, %v379, 0
    %384 = vmatpush.xpose.msra.mxu0 0.0
    %385 = vmatpush.xpose.msra.mxu0 0.0
    %386 = vmatpush.xpose.msra.mxu0 0.0
    %387 = vmatpush.xpose.msra.mxu0 0.0
    %388 = vmatpush.xpose.msra.mxu0 0.0
    %389 = vmatpush.xpose.msra.mxu0 0.0
    %390 = vmatpush.xpose.msra.mxu0 0.0
    %391 = vmatpush.xpose.msra.mxu0 0.0
    %392 = vmatpush.xpose.msra.mxu0 0.0
    %393 = vmatpush.xpose.msra.mxu0 0.0
    %394 = vmatpush.xpose.msra.mxu0 0.0
    %395 = vmatpush.xpose.msra.mxu0 0.0
    %396 = vmatpush.xpose.msra.mxu0 0.0
    %397 = vmatpush.xpose.msra.mxu0 0.0
    %398 = vmatpush.xpose.msra.mxu0 %v382
    %399 = vmatpush.xpose.msra.mxu0 %v380
    %400 = vmatmul.f32.gmra.mxu0 %v350
    %v401 = vpop.f32.mrf.mxu0
    %v402 = vadd.f32 0.0, %v401
    %403 = vdwg.mxu0
    %v404 = vsel %vm263, %v374, -inf
    %405 = vmax.xlane.f32.xlu0 %v404
    %v406 = vpop.xlane.xlu0 %405
    %v407 = vsel %vm263, %v402, -inf
    %408 = vmax.xlane.f32.xlu0 %v407
    %v409 = vpop.xlane.xlu0 %408
    %v410 = vsub.f32 %v374, %v406
    %v411 = vsub.f32 %v402, %v409
    %v412 = vmul.f32 %v410, 1.442695
    %v413 = vpow.pop %v412
    %v414 = vmul.f32 %v411, 1.442695
    %v415 = vpow.pop %v414
    %v416 = vsel %vm263, %v413, 0.0
    %417 = vadd.xlane.f32.xlu0 %v416
    %v418 = vpop.xlane.xlu0 %417
    %v419 = vsel %vm263, %v415, 0.0
    %420 = vadd.xlane.f32.xlu0 %v419
    %v421 = vpop.xlane.xlu0 %420
    %v422 = vrcp.pop %v418
    %v423 = vrcp.pop %v421
    %v424 = vmul.f32 %v413, %v422
    %v425 = vmul.f32 %v415, %v423
    %426 = vrot.lane.b32.xlu0 %v196, 88
    %v427 = vpop.permute.xlu0 %426
    %428 = vrot.lane.b32.xlu0 %v199, 88
    %v429 = vpop.permute.xlu0 %428
    %v433 = vsel %vm263, %v424, 0
    %435 = vmatpush.msra.mxu0 0.0
    %436 = vmatpush.msra.mxu0 0.0
    %437 = vmatpush.msra.mxu0 0.0
    %438 = vmatpush.msra.mxu0 0.0
    %439 = vmatpush.msra.mxu0 0.0
    %440 = vmatpush.msra.mxu0 0.0
    %441 = vmatpush.msra.mxu0 0.0
    %442 = vmatpush.msra.mxu0 0.0
    %443 = vmatpush.msra.mxu0 0.0
    %444 = vmatpush.msra.mxu0 0.0
    %445 = vmatpush.msra.mxu0 0.0
    %446 = vmatpush.msra.mxu0 0.0
    %447 = vmatpush.msra.mxu0 0.0
    %448 = vmatpush.msra.mxu0 0.0
    %449 = vmatpush.msra.mxu0 %v429
    %450 = vmatpush.msra.mxu0 %v427
    %451 = vmatmul.f32.gmra.mxu0 %v433
    %v452 = vpop.f32.mrf.mxu0
    %v453 = vadd.f32 0.0, %v452
    %454 = vdwg.mxu0
    %455 = vrot.lane.b32.xlu0 %v202, 88
    %v456 = vpop.permute.xlu0 %455
    %457 = vrot.lane.b32.xlu0 %v205, 88
    %v458 = vpop.permute.xlu0 %457
    %v462 = vsel %vm263, %v425, 0
    %464 = vmatpush.msra.mxu0 0.0
    %465 = vmatpush.msra.mxu0 0.0
    %466 = vmatpush.msra.mxu0 0.0
    %467 = vmatpush.msra.mxu0 0.0
    %468 = vmatpush.msra.mxu0 0.0
    %469 = vmatpush.msra.mxu0 0.0
    %470 = vmatpush.msra.mxu0 0.0
    %471 = vmatpush.msra.mxu0 0.0
    %472 = vmatpush.msra.mxu0 0.0
    %473 = vmatpush.msra.mxu0 0.0
    %474 = vmatpush.msra.mxu0 0.0
    %475 = vmatpush.msra.mxu0 0.0
    %476 = vmatpush.msra.mxu0 0.0
    %477 = vmatpush.msra.mxu0 0.0
    %478 = vmatpush.msra.mxu0 %v458
    %479 = vmatpush.msra.mxu0 %v456
    %480 = vmatmul.f32.gmra.mxu0 %v462
    %v481 = vpop.f32.mrf.mxu0
    %v482 = vadd.f32 0.0, %v481
    %483 = vdwg.mxu0
    %484 = vrot.lane.b32.xlu0 %v133, 112
    %v485 = vpop.permute.xlu0 %484
    %486 = vrot.lane.b32.xlu0 %v196, 112
    %v487 = vpop.permute.xlu0 %486
    %488 = vrot.lane.b32.xlu0 %v199, 112
    %v489 = vpop.permute.xlu0 %488
    %v490 = vsel %vm207, %v485, 0
    %v492 = vsel %vm207, %v487, 0
    %v494 = vsel %vm207, %v489, 0
    %496 = vmatpush.xpose.msra.mxu0 0.0
    %497 = vmatpush.xpose.msra.mxu0 0.0
    %498 = vmatpush.xpose.msra.mxu0 0.0
    %499 = vmatpush.xpose.msra.mxu0 0.0
    %500 = vmatpush.xpose.msra.mxu0 0.0
    %501 = vmatpush.xpose.msra.mxu0 0.0
    %502 = vmatpush.xpose.msra.mxu0 0.0
    %503 = vmatpush.xpose.msra.mxu0 0.0
    %504 = vmatpush.xpose.msra.mxu0 0.0
    %505 = vmatpush.xpose.msra.mxu0 0.0
    %506 = vmatpush.xpose.msra.mxu0 0.0
    %507 = vmatpush.xpose.msra.mxu0 0.0
    %508 = vmatpush.xpose.msra.mxu0 0.0
    %509 = vmatpush.xpose.msra.mxu0 0.0
    %510 = vmatpush.xpose.msra.mxu0 %v494
    %511 = vmatpush.xpose.msra.mxu0 %v492
    %512 = vmatmul.f32.gmra.mxu0 %v490
    %v513 = vpop.f32.mrf.mxu0
    %v514 = vadd.f32 0.0, %v513
    %515 = vdwg.mxu0
    %516 = vrot.lane.b32.xlu0 %v202, 112
    %v517 = vpop.permute.xlu0 %516
    %518 = vrot.lane.b32.xlu0 %v205, 112
    %v519 = vpop.permute.xlu0 %518
    %v520 = vsel %vm207, %v517, 0
    %v522 = vsel %vm207, %v519, 0
    %524 = vmatpush.xpose.msra.mxu0 0.0
    %525 = vmatpush.xpose.msra.mxu0 0.0
    %526 = vmatpush.xpose.msra.mxu0 0.0
    %527 = vmatpush.xpose.msra.mxu0 0.0
    %528 = vmatpush.xpose.msra.mxu0 0.0
    %529 = vmatpush.xpose.msra.mxu0 0.0
    %530 = vmatpush.xpose.msra.mxu0 0.0
    %531 = vmatpush.xpose.msra.mxu0 0.0
    %532 = vmatpush.xpose.msra.mxu0 0.0
    %533 = vmatpush.xpose.msra.mxu0 0.0
    %534 = vmatpush.xpose.msra.mxu0 0.0
    %535 = vmatpush.xpose.msra.mxu0 0.0
    %536 = vmatpush.xpose.msra.mxu0 0.0
    %537 = vmatpush.xpose.msra.mxu0 0.0
    %538 = vmatpush.xpose.msra.mxu0 %v522
    %539 = vmatpush.xpose.msra.mxu0 %v520
    %540 = vmatmul.f32.gmra.mxu0 %v490
    %v541 = vpop.f32.mrf.mxu0
    %v542 = vadd.f32 0.0, %v541
    %543 = vdwg.mxu0
    %v544 = vsel %vm263, %v514, -inf
    %545 = vmax.xlane.f32.xlu0 %v544
    %v546 = vpop.xlane.xlu0 %545
    %v547 = vsel %vm263, %v542, -inf
    %548 = vmax.xlane.f32.xlu0 %v547
    %v549 = vpop.xlane.xlu0 %548
    %v550 = vsub.f32 %v514, %v546
    %v551 = vsub.f32 %v542, %v549
    %v552 = vmul.f32 %v550, 1.442695
    %v553 = vpow.pop %v552
    %v554 = vmul.f32 %v551, 1.442695
    %v555 = vpow.pop %v554
    %v556 = vsel %vm263, %v553, 0.0
    %557 = vadd.xlane.f32.xlu0 %v556
    %v558 = vpop.xlane.xlu0 %557
    %v559 = vsel %vm263, %v555, 0.0
    %560 = vadd.xlane.f32.xlu0 %v559
    %v561 = vpop.xlane.xlu0 %560
    %v562 = vrcp.pop %v558
    %v563 = vrcp.pop %v561
    %v564 = vmul.f32 %v553, %v562
    %v565 = vmul.f32 %v555, %v563
    %566 = vrot.lane.b32.xlu0 %v196, 80
    %v567 = vpop.permute.xlu0 %566
    %568 = vrot.lane.b32.xlu0 %v199, 80
    %v569 = vpop.permute.xlu0 %568
    %v573 = vsel %vm263, %v564, 0
    %575 = vmatpush.msra.mxu0 0.0
    %576 = vmatpush.msra.mxu0 0.0
    %577 = vmatpush.msra.mxu0 0.0
    %578 = vmatpush.msra.mxu0 0.0
    %579 = vmatpush.msra.mxu0 0.0
    %580 = vmatpush.msra.mxu0 0.0
    %581 = vmatpush.msra.mxu0 0.0
    %582 = vmatpush.msra.mxu0 0.0
    %583 = vmatpush.msra.mxu0 0.0
    %584 = vmatpush.msra.mxu0 0.0
    %585 = vmatpush.msra.mxu0 0.0
    %586 = vmatpush.msra.mxu0 0.0
    %587 = vmatpush.msra.mxu0 0.0
    %588 = vmatpush.msra.mxu0 0.0
    %589 = vmatpush.msra.mxu0 %v569
    %590 = vmatpush.msra.mxu0 %v567
    %591 = vmatmul.f32.gmra.mxu0 %v573
    %v592 = vpop.f32.mrf.mxu0
    %v593 = vadd.f32 0.0, %v592
    %594 = vdwg.mxu0
    %595 = vrot.lane.b32.xlu0 %v202, 80
    %v596 = vpop.permute.xlu0 %595
    %597 = vrot.lane.b32.xlu0 %v205, 80
    %v598 = vpop.permute.xlu0 %597
    %v602 = vsel %vm263, %v565, 0
    %604 = vmatpush.msra.mxu0 0.0
    %605 = vmatpush.msra.mxu0 0.0
    %606 = vmatpush.msra.mxu0 0.0
    %607 = vmatpush.msra.mxu0 0.0
    %608 = vmatpush.msra.mxu0 0.0
    %609 = vmatpush.msra.mxu0 0.0
    %610 = vmatpush.msra.mxu0 0.0
    %611 = vmatpush.msra.mxu0 0.0
    %612 = vmatpush.msra.mxu0 0.0
    %613 = vmatpush.msra.mxu0 0.0
    %614 = vmatpush.msra.mxu0 0.0
    %615 = vmatpush.msra.mxu0 0.0
    %616 = vmatpush.msra.mxu0 0.0
    %617 = vmatpush.msra.mxu0 0.0
    %618 = vmatpush.msra.mxu0 %v598
    %619 = vmatpush.msra.mxu0 %v596
    %620 = vmatmul.f32.gmra.mxu0 %v602
    %v621 = vpop.f32.mrf.mxu0
    %v622 = vadd.f32 0.0, %v621
    %623 = vdwg.mxu0
    %624 = vrot.lane.b32.xlu0 %v133, 104
    %v625 = vpop.permute.xlu0 %624
    %626 = vrot.lane.b32.xlu0 %v196, 104
    %v627 = vpop.permute.xlu0 %626
    %628 = vrot.lane.b32.xlu0 %v199, 104
    %v629 = vpop.permute.xlu0 %628
    %v630 = vsel %vm207, %v625, 0
    %v632 = vsel %vm207, %v627, 0
    %v634 = vsel %vm207, %v629, 0
    %636 = vmatpush.xpose.msra.mxu0 0.0
    %637 = vmatpush.xpose.msra.mxu0 0.0
    %638 = vmatpush.xpose.msra.mxu0 0.0
    %639 = vmatpush.xpose.msra.mxu0 0.0
    %640 = vmatpush.xpose.msra.mxu0 0.0
    %641 = vmatpush.xpose.msra.mxu0 0.0
    %642 = vmatpush.xpose.msra.mxu0 0.0
    %643 = vmatpush.xpose.msra.mxu0 0.0
    %644 = vmatpush.xpose.msra.mxu0 0.0
    %645 = vmatpush.xpose.msra.mxu0 0.0
    %646 = vmatpush.xpose.msra.mxu0 0.0
    %647 = vmatpush.xpose.msra.mxu0 0.0
    %648 = vmatpush.xpose.msra.mxu0 0.0
    %649 = vmatpush.xpose.msra.mxu0 0.0
    %650 = vmatpush.xpose.msra.mxu0 %v634
    %651 = vmatpush.xpose.msra.mxu0 %v632
    %652 = vmatmul.f32.gmra.mxu0 %v630
    %v653 = vpop.f32.mrf.mxu0
    %v654 = vadd.f32 0.0, %v653
    %655 = vdwg.mxu0
    %656 = vrot.lane.b32.xlu0 %v202, 104
    %v657 = vpop.permute.xlu0 %656
    %658 = vrot.lane.b32.xlu0 %v205, 104
    %v659 = vpop.permute.xlu0 %658
    %v660 = vsel %vm207, %v657, 0
    %v662 = vsel %vm207, %v659, 0
    %664 = vmatpush.xpose.msra.mxu0 0.0
    %665 = vmatpush.xpose.msra.mxu0 0.0
    %666 = vmatpush.xpose.msra.mxu0 0.0
    %667 = vmatpush.xpose.msra.mxu0 0.0
    %668 = vmatpush.xpose.msra.mxu0 0.0
    %669 = vmatpush.xpose.msra.mxu0 0.0
    %670 = vmatpush.xpose.msra.mxu0 0.0
    %671 = vmatpush.xpose.msra.mxu0 0.0
    %672 = vmatpush.xpose.msra.mxu0 0.0
    %673 = vmatpush.xpose.msra.mxu0 0.0
    %674 = vmatpush.xpose.msra.mxu0 0.0
    %675 = vmatpush.xpose.msra.mxu0 0.0
    %676 = vmatpush.xpose.msra.mxu0 0.0
    %677 = vmatpush.xpose.msra.mxu0 0.0
    %678 = vmatpush.xpose.msra.mxu0 %v662
    %679 = vmatpush.xpose.msra.mxu0 %v660
    %680 = vmatmul.f32.gmra.mxu0 %v630
    %v681 = vpop.f32.mrf.mxu0
    %v682 = vadd.f32 0.0, %v681
    %683 = vdwg.mxu0
    %v684 = vsel %vm263, %v654, -inf
    %685 = vmax.xlane.f32.xlu0 %v684
    %v686 = vpop.xlane.xlu0 %685
    %v687 = vsel %vm263, %v682, -inf
    %688 = vmax.xlane.f32.xlu0 %v687
    %v689 = vpop.xlane.xlu0 %688
    %v690 = vsub.f32 %v654, %v686
    %v691 = vsub.f32 %v682, %v689
    %v692 = vmul.f32 %v690, 1.442695
    %v693 = vpow.pop %v692
    %v694 = vmul.f32 %v691, 1.442695
    %v695 = vpow.pop %v694
    %v696 = vsel %vm263, %v693, 0.0
    %697 = vadd.xlane.f32.xlu0 %v696
    %v698 = vpop.xlane.xlu0 %697
    %v699 = vsel %vm263, %v695, 0.0
    %700 = vadd.xlane.f32.xlu0 %v699
    %v701 = vpop.xlane.xlu0 %700
    %v702 = vrcp.pop %v698
    %v703 = vrcp.pop %v701
    %v704 = vmul.f32 %v693, %v702
    %v705 = vmul.f32 %v695, %v703
    %706 = vrot.lane.b32.xlu0 %v196, 72
    %v707 = vpop.permute.xlu0 %706
    %708 = vrot.lane.b32.xlu0 %v199, 72
    %v709 = vpop.permute.xlu0 %708
    %v713 = vsel %vm263, %v704, 0
    %715 = vmatpush.msra.mxu0 0.0
    %716 = vmatpush.msra.mxu0 0.0
    %717 = vmatpush.msra.mxu0 0.0
    %718 = vmatpush.msra.mxu0 0.0
    %719 = vmatpush.msra.mxu0 0.0
    %720 = vmatpush.msra.mxu0 0.0
    %721 = vmatpush.msra.mxu0 0.0
    %722 = vmatpush.msra.mxu0 0.0
    %723 = vmatpush.msra.mxu0 0.0
    %724 = vmatpush.msra.mxu0 0.0
    %725 = vmatpush.msra.mxu0 0.0
    %726 = vmatpush.msra.mxu0 0.0
    %727 = vmatpush.msra.mxu0 0.0
    %728 = vmatpush.msra.mxu0 0.0
    %729 = vmatpush.msra.mxu0 %v709
    %730 = vmatpush.msra.mxu0 %v707
    %731 = vmatmul.f32.gmra.mxu0 %v713
    %v732 = vpop.f32.mrf.mxu0
    %v733 = vadd.f32 0.0, %v732
    %734 = vdwg.mxu0
    %735 = vrot.lane.b32.xlu0 %v202, 72
    %v736 = vpop.permute.xlu0 %735
    %737 = vrot.lane.b32.xlu0 %v205, 72
    %v738 = vpop.permute.xlu0 %737
    %v742 = vsel %vm263, %v705, 0
    %744 = vmatpush.msra.mxu0 0.0
    %745 = vmatpush.msra.mxu0 0.0
    %746 = vmatpush.msra.mxu0 0.0
    %747 = vmatpush.msra.mxu0 0.0
    %748 = vmatpush.msra.mxu0 0.0
    %749 = vmatpush.msra.mxu0 0.0
    %750 = vmatpush.msra.mxu0 0.0
    %751 = vmatpush.msra.mxu0 0.0
    %752 = vmatpush.msra.mxu0 0.0
    %753 = vmatpush.msra.mxu0 0.0
    %754 = vmatpush.msra.mxu0 0.0
    %755 = vmatpush.msra.mxu0 0.0
    %756 = vmatpush.msra.mxu0 0.0
    %757 = vmatpush.msra.mxu0 0.0
    %758 = vmatpush.msra.mxu0 %v738
    %759 = vmatpush.msra.mxu0 %v736
    %760 = vmatmul.f32.gmra.mxu0 %v742
    %v761 = vpop.f32.mrf.mxu0
    %v762 = vadd.f32 0.0, %v761
    %763 = vdwg.mxu0
    %766 = vrot.lane.b32.xlu0 %v453, 8
    %v767 = vpop.permute.xlu0 %766
    %768 = vrot.lane.b32.xlu0 %v482, 8
    %v769 = vpop.permute.xlu0 %768
    %774 = vrot.lane.b32.xlu0 %v593, 16
    %v775 = vpop.permute.xlu0 %774
    %776 = vrot.lane.b32.xlu0 %v622, 16
    %v777 = vpop.permute.xlu0 %776
    %782 = vrot.lane.b32.xlu0 %v733, 24
    %v783 = vpop.permute.xlu0 %782
    %784 = vrot.lane.b32.xlu0 %v762, 24
    %v785 = vpop.permute.xlu0 %784
    %v788 = vsel %vm207, %v313, %v767
    %v789 = vsel %vm207, %v342, %v769
    %v790 = vsel %vm263, %v788, %v775
    %v791 = vsel %vm263, %v789, %v777
    %vm792 = vcmask 195584
    %v793 = vsel %vm792, %v790, %v783
    %v794 = vsel %vm792, %v791, %v785
    %v796 = vsel %vm165, %v793, 0
    %v799 = vsel %vm165, %v794, 0
    %801 = vmatpush.msra.mxu0 0.0
    %802 = vmatpush.msra.mxu0 0.0
    %803 = vmatpush.msra.mxu0 0.0
    %804 = vmatpush.msra.mxu0 0.0
    %805 = vmatpush.msra.mxu0 0.0
    %806 = vmatpush.msra.mxu0 0.0
    %807 = vmatpush.msra.mxu0 0.0
    %808 = vmatpush.msra.mxu0 0.0
    %809 = vmatpush.msra.mxu0 0.0
    %810 = vmatpush.msra.mxu0 0.0
    %811 = vmatpush.msra.mxu0 0.0
    %812 = vmatpush.msra.mxu0 0.0
    %813 = vmatpush.msra.mxu0 %v146
    %814 = vmatpush.msra.mxu0 %v145
    %815 = vmatpush.msra.mxu0 %v144
    %816 = vmatpush.msra.mxu0 %v143
    %817 = vmatmul.f32.gmra.mxu0 %v796
    %v818 = vpop.f32.mrf.mxu0
    %v819 = vadd.f32 %v134, %v818
    %820 = vmatmul.f32.gmra.mxu0 %v799
    %v821 = vpop.f32.mrf.mxu0
    %v822 = vadd.f32 %v134, %v821
    %823 = vdwg.mxu0
    %v824 = vsel %vm165, %v819, 0.0
    %825 = vadd.xlane.f32.xlu0 %v824
    %v826 = vpop.xlane.xlu0 %825
    %v827 = vsel %vm165, %v822, 0.0
    %828 = vadd.xlane.f32.xlu0 %v827
    %v829 = vpop.xlane.xlu0 %828
    %v830 = vrcp.pop 32.0
    %v831 = vmul.f32 32.0, %v830
    %v832 = vsub.f32 1.0, %v831
    %v833 = vmul.f32 %v830, %v832
    %v834 = vadd.f32 %v830, %v833
    %vm835 = vweird.f32 %v830
    %v836 = vsel %vm835, %v830, %v834
    %v837 = vmul.f32 %v826, %v836
    %v838 = vmul.f32 %v829, %v836
    %v839 = vsub.f32 %v819, %v837
    %v840 = vsub.f32 %v822, %v838
    %v841 = vmul.f32 %v839, %v839
    %v842 = vmul.f32 %v840, %v840
    %v843 = vsel %vm165, %v841, 0.0
    %844 = vadd.xlane.f32.xlu0 %v843
    %v845 = vpop.xlane.xlu0 %844
    %v846 = vsel %vm165, %v842, 0.0
    %847 = vadd.xlane.f32.xlu0 %v846
    %v848 = vpop.xlane.xlu0 %847
    %v849 = vmul.f32 %v845, %v836
    %v850 = vmul.f32 %v848, %v836
    %v851 = vadd.f32 %v849, 1e-06
    %v852 = vadd.f32 %v850, 1e-06
    %v853 = vrsqrt.pop %v851
    %v854 = vmul.f32 %v853, %v851
    %v855 = vmul.f32 %v854, %v853
    %v856 = vmul.f32 0.5, %v855
    %v857 = vsub.f32 1.5, %v856
    %v858 = vmul.f32 %v853, %v857
    %vm859 = vweird.f32 %v851
    %vm860 = vweird.f32 %v853
    %vm861 = vmor %vm859, %vm860
    %v862 = vsel %vm861, %v853, %v858
    %v863 = vrsqrt.pop %v852
    %v864 = vmul.f32 %v863, %v852
    %v865 = vmul.f32 %v864, %v863
    %v866 = vmul.f32 0.5, %v865
    %v867 = vsub.f32 1.5, %v866
    %v868 = vmul.f32 %v863, %v867
    %vm869 = vweird.f32 %v852
    %vm870 = vweird.f32 %v863
    %vm871 = vmor %vm869, %vm870
    %v872 = vsel %vm871, %v863, %v868
    %v873 = vmul.f32 %v839, %v862
    %v874 = vmul.f32 %v840, %v872
    %v876 = vperm.slane %v147, 0
    %v878 = vmul.f32 %v873, %v876
    %v879 = vmul.f32 %v874, %v876
    %v881 = vperm.slane %v148, 0
    %v883 = vadd.f32 %v878, %v881
    %v884 = vadd.f32 %v879, %v881
    %v886 = vsel %vm165, %v883, 0
    %v889 = vsel %vm165, %v884, 0
    %891 = vmatpush.msra.mxu0 0.0
    %892 = vmatpush.msra.mxu0 0.0
    %893 = vmatpush.msra.mxu0 0.0
    %894 = vmatpush.msra.mxu0 0.0
    %895 = vmatpush.msra.mxu0 0.0
    %896 = vmatpush.msra.mxu0 0.0
    %897 = vmatpush.msra.mxu0 0.0
    %898 = vmatpush.msra.mxu0 0.0
    %899 = vmatpush.msra.mxu0 0.0
    %900 = vmatpush.msra.mxu0 0.0
    %901 = vmatpush.msra.mxu0 0.0
    %902 = vmatpush.msra.mxu0 0.0
    %903 = vmatpush.msra.mxu0 %v138
    %904 = vmatpush.msra.mxu0 %v137
    %905 = vmatpush.msra.mxu0 %v136
    %906 = vmatpush.msra.mxu0 %v135
    %907 = vmatmul.f32.gmra.mxu0 %v886
    %v908 = vpop.f32.mrf.mxu0
    %v909 = vadd.f32 0.0, %v908
    %910 = vmatmul.f32.gmra.mxu0 %v889
    %v911 = vpop.f32.mrf.mxu0
    %v912 = vadd.f32 0.0, %v911
    %913 = vdwg.mxu0
    %v914 = vmul.f32 %v909, 0.35355338
    %v915 = vmul.f32 %v912, 0.35355338
    %v917 = vsel %vm165, %v129, 0
    %v920 = vsel %vm165, %v130, 0
    %v923 = vsel %vm165, %v131, 0
    %v926 = vsel %vm165, %v132, 0
    %928 = vmatpush.msra.mxu0 0.0
    %929 = vmatpush.msra.mxu0 0.0
    %930 = vmatpush.msra.mxu0 0.0
    %931 = vmatpush.msra.mxu0 0.0
    %932 = vmatpush.msra.mxu0 0.0
    %933 = vmatpush.msra.mxu0 0.0
    %934 = vmatpush.msra.mxu0 0.0
    %935 = vmatpush.msra.mxu0 0.0
    %936 = vmatpush.msra.mxu0 0.0
    %937 = vmatpush.msra.mxu0 0.0
    %938 = vmatpush.msra.mxu0 0.0
    %939 = vmatpush.msra.mxu0 0.0
    %940 = vmatpush.msra.mxu0 %v142
    %941 = vmatpush.msra.mxu0 %v141
    %942 = vmatpush.msra.mxu0 %v140
    %943 = vmatpush.msra.mxu0 %v139
    %944 = vmatmul.f32.gmra.mxu0 %v917
    %v945 = vpop.f32.mrf.mxu0
    %v946 = vadd.f32 0.0, %v945
    %947 = vmatmul.f32.gmra.mxu0 %v920
    %v948 = vpop.f32.mrf.mxu0
    %v949 = vadd.f32 0.0, %v948
    %950 = vmatmul.f32.gmra.mxu0 %v923
    %v951 = vpop.f32.mrf.mxu0
    %v952 = vadd.f32 0.0, %v951
    %953 = vmatmul.f32.gmra.mxu0 %v926
    %v954 = vpop.f32.mrf.mxu0
    %v955 = vadd.f32 0.0, %v954
    %956 = vdwg.mxu0
    %v958 = vsel %vm207, %v914, 0
    %v961 = vsel %vm207, %v946, 0
    %v964 = vsel %vm207, %v949, 0
    %966 = vmatpush.xpose.msra.mxu0 0.0
    %967 = vmatpush.xpose.msra.mxu0 0.0
    %968 = vmatpush.xpose.msra.mxu0 0.0
    %969 = vmatpush.xpose.msra.mxu0 0.0
    %970 = vmatpush.xpose.msra.mxu0 0.0
    %971 = vmatpush.xpose.msra.mxu0 0.0
    %972 = vmatpush.xpose.msra.mxu0 0.0
    %973 = vmatpush.xpose.msra.mxu0 0.0
    %974 = vmatpush.xpose.msra.mxu0 0.0
    %975 = vmatpush.xpose.msra.mxu0 0.0
    %976 = vmatpush.xpose.msra.mxu0 0.0
    %977 = vmatpush.xpose.msra.mxu0 0.0
    %978 = vmatpush.xpose.msra.mxu0 0.0
    %979 = vmatpush.xpose.msra.mxu0 0.0
    %980 = vmatpush.xpose.msra.mxu0 %v964
    %981 = vmatpush.xpose.msra.mxu0 %v961
    %982 = vmatmul.f32.gmra.mxu0 %v958
    %v983 = vpop.f32.mrf.mxu0
    %v984 = vadd.f32 0.0, %v983
    %985 = vdwg.mxu0
    %v987 = vsel %vm207, %v915, 0
    %v990 = vsel %vm207, %v952, 0
    %v993 = vsel %vm207, %v955, 0
    %995 = vmatpush.xpose.msra.mxu0 0.0
    %996 = vmatpush.xpose.msra.mxu0 0.0
    %997 = vmatpush.xpose.msra.mxu0 0.0
    %998 = vmatpush.xpose.msra.mxu0 0.0
    %999 = vmatpush.xpose.msra.mxu0 0.0
    %1000 = vmatpush.xpose.msra.mxu0 0.0
    %1001 = vmatpush.xpose.msra.mxu0 0.0
    %1002 = vmatpush.xpose.msra.mxu0 0.0
    %1003 = vmatpush.xpose.msra.mxu0 0.0
    %1004 = vmatpush.xpose.msra.mxu0 0.0
    %1005 = vmatpush.xpose.msra.mxu0 0.0
    %1006 = vmatpush.xpose.msra.mxu0 0.0
    %1007 = vmatpush.xpose.msra.mxu0 0.0
    %1008 = vmatpush.xpose.msra.mxu0 0.0
    %1009 = vmatpush.xpose.msra.mxu0 %v993
    %1010 = vmatpush.xpose.msra.mxu0 %v990
    %1011 = vmatmul.f32.gmra.mxu0 %v987
    %v1012 = vpop.f32.mrf.mxu0
    %v1013 = vadd.f32 0.0, %v1012
    %1014 = vdwg.mxu0
    %v1015 = vsel %vm263, %v984, -inf
    %1016 = vmax.xlane.f32.xlu0 %v1015
    %v1017 = vpop.xlane.xlu0 %1016
    %v1018 = vsel %vm263, %v1013, -inf
    %1019 = vmax.xlane.f32.xlu0 %v1018
    %v1020 = vpop.xlane.xlu0 %1019
    %v1021 = vsub.f32 %v984, %v1017
    %v1022 = vsub.f32 %v1013, %v1020
    %v1023 = vmul.f32 %v1021, 1.442695
    %v1024 = vpow.pop %v1023
    %v1025 = vmul.f32 %v1022, 1.442695
    %v1026 = vpow.pop %v1025
    %v1027 = vsel %vm263, %v1024, 0.0
    %1028 = vadd.xlane.f32.xlu0 %v1027
    %v1029 = vpop.xlane.xlu0 %1028
    %v1030 = vsel %vm263, %v1026, 0.0
    %1031 = vadd.xlane.f32.xlu0 %v1030
    %v1032 = vpop.xlane.xlu0 %1031
    %v1033 = vrcp.pop %v1029
    %v1034 = vrcp.pop %v1032
    %v1035 = vmul.f32 %v1024, %v1033
    %v1036 = vmul.f32 %v1026, %v1034
    %1037 = vrot.lane.b32.xlu0 %v946, 96
    %v1038 = vpop.permute.xlu0 %1037
    %1039 = vrot.lane.b32.xlu0 %v949, 96
    %v1040 = vpop.permute.xlu0 %1039
    %v1044 = vsel %vm263, %v1035, 0
    %1046 = vmatpush.msra.mxu0 0.0
    %1047 = vmatpush.msra.mxu0 0.0
    %1048 = vmatpush.msra.mxu0 0.0
    %1049 = vmatpush.msra.mxu0 0.0
    %1050 = vmatpush.msra.mxu0 0.0
    %1051 = vmatpush.msra.mxu0 0.0
    %1052 = vmatpush.msra.mxu0 0.0
    %1053 = vmatpush.msra.mxu0 0.0
    %1054 = vmatpush.msra.mxu0 0.0
    %1055 = vmatpush.msra.mxu0 0.0
    %1056 = vmatpush.msra.mxu0 0.0
    %1057 = vmatpush.msra.mxu0 0.0
    %1058 = vmatpush.msra.mxu0 0.0
    %1059 = vmatpush.msra.mxu0 0.0
    %1060 = vmatpush.msra.mxu0 %v1040
    %1061 = vmatpush.msra.mxu0 %v1038
    %1062 = vmatmul.f32.gmra.mxu0 %v1044
    %v1063 = vpop.f32.mrf.mxu0
    %v1064 = vadd.f32 0.0, %v1063
    %1065 = vdwg.mxu0
    %1066 = vrot.lane.b32.xlu0 %v952, 96
    %v1067 = vpop.permute.xlu0 %1066
    %1068 = vrot.lane.b32.xlu0 %v955, 96
    %v1069 = vpop.permute.xlu0 %1068
    %v1073 = vsel %vm263, %v1036, 0
    %1075 = vmatpush.msra.mxu0 0.0
    %1076 = vmatpush.msra.mxu0 0.0
    %1077 = vmatpush.msra.mxu0 0.0
    %1078 = vmatpush.msra.mxu0 0.0
    %1079 = vmatpush.msra.mxu0 0.0
    %1080 = vmatpush.msra.mxu0 0.0
    %1081 = vmatpush.msra.mxu0 0.0
    %1082 = vmatpush.msra.mxu0 0.0
    %1083 = vmatpush.msra.mxu0 0.0
    %1084 = vmatpush.msra.mxu0 0.0
    %1085 = vmatpush.msra.mxu0 0.0
    %1086 = vmatpush.msra.mxu0 0.0
    %1087 = vmatpush.msra.mxu0 0.0
    %1088 = vmatpush.msra.mxu0 0.0
    %1089 = vmatpush.msra.mxu0 %v1069
    %1090 = vmatpush.msra.mxu0 %v1067
    %1091 = vmatmul.f32.gmra.mxu0 %v1073
    %v1092 = vpop.f32.mrf.mxu0
    %v1093 = vadd.f32 0.0, %v1092
    %1094 = vdwg.mxu0
    %1095 = vrot.lane.b32.xlu0 %v914, 120
    %v1096 = vpop.permute.xlu0 %1095
    %1097 = vrot.lane.b32.xlu0 %v946, 120
    %v1098 = vpop.permute.xlu0 %1097
    %1099 = vrot.lane.b32.xlu0 %v949, 120
    %v1100 = vpop.permute.xlu0 %1099
    %v1101 = vsel %vm207, %v1096, 0
    %v1103 = vsel %vm207, %v1098, 0
    %v1105 = vsel %vm207, %v1100, 0
    %1107 = vmatpush.xpose.msra.mxu0 0.0
    %1108 = vmatpush.xpose.msra.mxu0 0.0
    %1109 = vmatpush.xpose.msra.mxu0 0.0
    %1110 = vmatpush.xpose.msra.mxu0 0.0
    %1111 = vmatpush.xpose.msra.mxu0 0.0
    %1112 = vmatpush.xpose.msra.mxu0 0.0
    %1113 = vmatpush.xpose.msra.mxu0 0.0
    %1114 = vmatpush.xpose.msra.mxu0 0.0
    %1115 = vmatpush.xpose.msra.mxu0 0.0
    %1116 = vmatpush.xpose.msra.mxu0 0.0
    %1117 = vmatpush.xpose.msra.mxu0 0.0
    %1118 = vmatpush.xpose.msra.mxu0 0.0
    %1119 = vmatpush.xpose.msra.mxu0 0.0
    %1120 = vmatpush.xpose.msra.mxu0 0.0
    %1121 = vmatpush.xpose.msra.mxu0 %v1105
    %1122 = vmatpush.xpose.msra.mxu0 %v1103
    %1123 = vmatmul.f32.gmra.mxu0 %v1101
    %v1124 = vpop.f32.mrf.mxu0
    %v1125 = vadd.f32 0.0, %v1124
    %1126 = vdwg.mxu0
    %1127 = vrot.lane.b32.xlu0 %v915, 120
    %v1128 = vpop.permute.xlu0 %1127
    %1129 = vrot.lane.b32.xlu0 %v952, 120
    %v1130 = vpop.permute.xlu0 %1129
    %1131 = vrot.lane.b32.xlu0 %v955, 120
    %v1132 = vpop.permute.xlu0 %1131
    %v1133 = vsel %vm207, %v1128, 0
    %v1135 = vsel %vm207, %v1130, 0
    %v1137 = vsel %vm207, %v1132, 0
    %1139 = vmatpush.xpose.msra.mxu0 0.0
    %1140 = vmatpush.xpose.msra.mxu0 0.0
    %1141 = vmatpush.xpose.msra.mxu0 0.0
    %1142 = vmatpush.xpose.msra.mxu0 0.0
    %1143 = vmatpush.xpose.msra.mxu0 0.0
    %1144 = vmatpush.xpose.msra.mxu0 0.0
    %1145 = vmatpush.xpose.msra.mxu0 0.0
    %1146 = vmatpush.xpose.msra.mxu0 0.0
    %1147 = vmatpush.xpose.msra.mxu0 0.0
    %1148 = vmatpush.xpose.msra.mxu0 0.0
    %1149 = vmatpush.xpose.msra.mxu0 0.0
    %1150 = vmatpush.xpose.msra.mxu0 0.0
    %1151 = vmatpush.xpose.msra.mxu0 0.0
    %1152 = vmatpush.xpose.msra.mxu0 0.0
    %1153 = vmatpush.xpose.msra.mxu0 %v1137
    %1154 = vmatpush.xpose.msra.mxu0 %v1135
    %1155 = vmatmul.f32.gmra.mxu0 %v1133
    %v1156 = vpop.f32.mrf.mxu0
    %v1157 = vadd.f32 0.0, %v1156
    %1158 = vdwg.mxu0
    %v1159 = vsel %vm263, %v1125, -inf
    %1160 = vmax.xlane.f32.xlu0 %v1159
    %v1161 = vpop.xlane.xlu0 %1160
    %v1162 = vsel %vm263, %v1157, -inf
    %1163 = vmax.xlane.f32.xlu0 %v1162
    %v1164 = vpop.xlane.xlu0 %1163
    %v1165 = vsub.f32 %v1125, %v1161
    %v1166 = vsub.f32 %v1157, %v1164
    %v1167 = vmul.f32 %v1165, 1.442695
    %v1168 = vpow.pop %v1167
    %v1169 = vmul.f32 %v1166, 1.442695
    %v1170 = vpow.pop %v1169
    %v1171 = vsel %vm263, %v1168, 0.0
    %1172 = vadd.xlane.f32.xlu0 %v1171
    %v1173 = vpop.xlane.xlu0 %1172
    %v1174 = vsel %vm263, %v1170, 0.0
    %1175 = vadd.xlane.f32.xlu0 %v1174
    %v1176 = vpop.xlane.xlu0 %1175
    %v1177 = vrcp.pop %v1173
    %v1178 = vrcp.pop %v1176
    %v1179 = vmul.f32 %v1168, %v1177
    %v1180 = vmul.f32 %v1170, %v1178
    %1181 = vrot.lane.b32.xlu0 %v946, 88
    %v1182 = vpop.permute.xlu0 %1181
    %1183 = vrot.lane.b32.xlu0 %v949, 88
    %v1184 = vpop.permute.xlu0 %1183
    %v1188 = vsel %vm263, %v1179, 0
    %1190 = vmatpush.msra.mxu0 0.0
    %1191 = vmatpush.msra.mxu0 0.0
    %1192 = vmatpush.msra.mxu0 0.0
    %1193 = vmatpush.msra.mxu0 0.0
    %1194 = vmatpush.msra.mxu0 0.0
    %1195 = vmatpush.msra.mxu0 0.0
    %1196 = vmatpush.msra.mxu0 0.0
    %1197 = vmatpush.msra.mxu0 0.0
    %1198 = vmatpush.msra.mxu0 0.0
    %1199 = vmatpush.msra.mxu0 0.0
    %1200 = vmatpush.msra.mxu0 0.0
    %1201 = vmatpush.msra.mxu0 0.0
    %1202 = vmatpush.msra.mxu0 0.0
    %1203 = vmatpush.msra.mxu0 0.0
    %1204 = vmatpush.msra.mxu0 %v1184
    %1205 = vmatpush.msra.mxu0 %v1182
    %1206 = vmatmul.f32.gmra.mxu0 %v1188
    %v1207 = vpop.f32.mrf.mxu0
    %v1208 = vadd.f32 0.0, %v1207
    %1209 = vdwg.mxu0
    %1210 = vrot.lane.b32.xlu0 %v952, 88
    %v1211 = vpop.permute.xlu0 %1210
    %1212 = vrot.lane.b32.xlu0 %v955, 88
    %v1213 = vpop.permute.xlu0 %1212
    %v1217 = vsel %vm263, %v1180, 0
    %1219 = vmatpush.msra.mxu0 0.0
    %1220 = vmatpush.msra.mxu0 0.0
    %1221 = vmatpush.msra.mxu0 0.0
    %1222 = vmatpush.msra.mxu0 0.0
    %1223 = vmatpush.msra.mxu0 0.0
    %1224 = vmatpush.msra.mxu0 0.0
    %1225 = vmatpush.msra.mxu0 0.0
    %1226 = vmatpush.msra.mxu0 0.0
    %1227 = vmatpush.msra.mxu0 0.0
    %1228 = vmatpush.msra.mxu0 0.0
    %1229 = vmatpush.msra.mxu0 0.0
    %1230 = vmatpush.msra.mxu0 0.0
    %1231 = vmatpush.msra.mxu0 0.0
    %1232 = vmatpush.msra.mxu0 0.0
    %1233 = vmatpush.msra.mxu0 %v1213
    %1234 = vmatpush.msra.mxu0 %v1211
    %1235 = vmatmul.f32.gmra.mxu0 %v1217
    %v1236 = vpop.f32.mrf.mxu0
    %v1237 = vadd.f32 0.0, %v1236
    %1238 = vdwg.mxu0
    %1239 = vrot.lane.b32.xlu0 %v914, 112
    %v1240 = vpop.permute.xlu0 %1239
    %1241 = vrot.lane.b32.xlu0 %v946, 112
    %v1242 = vpop.permute.xlu0 %1241
    %1243 = vrot.lane.b32.xlu0 %v949, 112
    %v1244 = vpop.permute.xlu0 %1243
    %v1245 = vsel %vm207, %v1240, 0
    %v1247 = vsel %vm207, %v1242, 0
    %v1249 = vsel %vm207, %v1244, 0
    %1251 = vmatpush.xpose.msra.mxu0 0.0
    %1252 = vmatpush.xpose.msra.mxu0 0.0
    %1253 = vmatpush.xpose.msra.mxu0 0.0
    %1254 = vmatpush.xpose.msra.mxu0 0.0
    %1255 = vmatpush.xpose.msra.mxu0 0.0
    %1256 = vmatpush.xpose.msra.mxu0 0.0
    %1257 = vmatpush.xpose.msra.mxu0 0.0
    %1258 = vmatpush.xpose.msra.mxu0 0.0
    %1259 = vmatpush.xpose.msra.mxu0 0.0
    %1260 = vmatpush.xpose.msra.mxu0 0.0
    %1261 = vmatpush.xpose.msra.mxu0 0.0
    %1262 = vmatpush.xpose.msra.mxu0 0.0
    %1263 = vmatpush.xpose.msra.mxu0 0.0
    %1264 = vmatpush.xpose.msra.mxu0 0.0
    %1265 = vmatpush.xpose.msra.mxu0 %v1249
    %1266 = vmatpush.xpose.msra.mxu0 %v1247
    %1267 = vmatmul.f32.gmra.mxu0 %v1245
    %v1268 = vpop.f32.mrf.mxu0
    %v1269 = vadd.f32 0.0, %v1268
    %1270 = vdwg.mxu0
    %1271 = vrot.lane.b32.xlu0 %v915, 112
    %v1272 = vpop.permute.xlu0 %1271
    %1273 = vrot.lane.b32.xlu0 %v952, 112
    %v1274 = vpop.permute.xlu0 %1273
    %1275 = vrot.lane.b32.xlu0 %v955, 112
    %v1276 = vpop.permute.xlu0 %1275
    %v1277 = vsel %vm207, %v1272, 0
    %v1279 = vsel %vm207, %v1274, 0
    %v1281 = vsel %vm207, %v1276, 0
    %1283 = vmatpush.xpose.msra.mxu0 0.0
    %1284 = vmatpush.xpose.msra.mxu0 0.0
    %1285 = vmatpush.xpose.msra.mxu0 0.0
    %1286 = vmatpush.xpose.msra.mxu0 0.0
    %1287 = vmatpush.xpose.msra.mxu0 0.0
    %1288 = vmatpush.xpose.msra.mxu0 0.0
    %1289 = vmatpush.xpose.msra.mxu0 0.0
    %1290 = vmatpush.xpose.msra.mxu0 0.0
    %1291 = vmatpush.xpose.msra.mxu0 0.0
    %1292 = vmatpush.xpose.msra.mxu0 0.0
    %1293 = vmatpush.xpose.msra.mxu0 0.0
    %1294 = vmatpush.xpose.msra.mxu0 0.0
    %1295 = vmatpush.xpose.msra.mxu0 0.0
    %1296 = vmatpush.xpose.msra.mxu0 0.0
    %1297 = vmatpush.xpose.msra.mxu0 %v1281
    %1298 = vmatpush.xpose.msra.mxu0 %v1279
    %1299 = vmatmul.f32.gmra.mxu0 %v1277
    %v1300 = vpop.f32.mrf.mxu0
    %v1301 = vadd.f32 0.0, %v1300
    %1302 = vdwg.mxu0
    %v1303 = vsel %vm263, %v1269, -inf
    %1304 = vmax.xlane.f32.xlu0 %v1303
    %v1305 = vpop.xlane.xlu0 %1304
    %v1306 = vsel %vm263, %v1301, -inf
    %1307 = vmax.xlane.f32.xlu0 %v1306
    %v1308 = vpop.xlane.xlu0 %1307
    %v1309 = vsub.f32 %v1269, %v1305
    %v1310 = vsub.f32 %v1301, %v1308
    %v1311 = vmul.f32 %v1309, 1.442695
    %v1312 = vpow.pop %v1311
    %v1313 = vmul.f32 %v1310, 1.442695
    %v1314 = vpow.pop %v1313
    %v1315 = vsel %vm263, %v1312, 0.0
    %1316 = vadd.xlane.f32.xlu0 %v1315
    %v1317 = vpop.xlane.xlu0 %1316
    %v1318 = vsel %vm263, %v1314, 0.0
    %1319 = vadd.xlane.f32.xlu0 %v1318
    %v1320 = vpop.xlane.xlu0 %1319
    %v1321 = vrcp.pop %v1317
    %v1322 = vrcp.pop %v1320
    %v1323 = vmul.f32 %v1312, %v1321
    %v1324 = vmul.f32 %v1314, %v1322
    %1325 = vrot.lane.b32.xlu0 %v946, 80
    %v1326 = vpop.permute.xlu0 %1325
    %1327 = vrot.lane.b32.xlu0 %v949, 80
    %v1328 = vpop.permute.xlu0 %1327
    %v1332 = vsel %vm263, %v1323, 0
    %1334 = vmatpush.msra.mxu0 0.0
    %1335 = vmatpush.msra.mxu0 0.0
    %1336 = vmatpush.msra.mxu0 0.0
    %1337 = vmatpush.msra.mxu0 0.0
    %1338 = vmatpush.msra.mxu0 0.0
    %1339 = vmatpush.msra.mxu0 0.0
    %1340 = vmatpush.msra.mxu0 0.0
    %1341 = vmatpush.msra.mxu0 0.0
    %1342 = vmatpush.msra.mxu0 0.0
    %1343 = vmatpush.msra.mxu0 0.0
    %1344 = vmatpush.msra.mxu0 0.0
    %1345 = vmatpush.msra.mxu0 0.0
    %1346 = vmatpush.msra.mxu0 0.0
    %1347 = vmatpush.msra.mxu0 0.0
    %1348 = vmatpush.msra.mxu0 %v1328
    %1349 = vmatpush.msra.mxu0 %v1326
    %1350 = vmatmul.f32.gmra.mxu0 %v1332
    %v1351 = vpop.f32.mrf.mxu0
    %v1352 = vadd.f32 0.0, %v1351
    %1353 = vdwg.mxu0
    %1354 = vrot.lane.b32.xlu0 %v952, 80
    %v1355 = vpop.permute.xlu0 %1354
    %1356 = vrot.lane.b32.xlu0 %v955, 80
    %v1357 = vpop.permute.xlu0 %1356
    %v1361 = vsel %vm263, %v1324, 0
    %1363 = vmatpush.msra.mxu0 0.0
    %1364 = vmatpush.msra.mxu0 0.0
    %1365 = vmatpush.msra.mxu0 0.0
    %1366 = vmatpush.msra.mxu0 0.0
    %1367 = vmatpush.msra.mxu0 0.0
    %1368 = vmatpush.msra.mxu0 0.0
    %1369 = vmatpush.msra.mxu0 0.0
    %1370 = vmatpush.msra.mxu0 0.0
    %1371 = vmatpush.msra.mxu0 0.0
    %1372 = vmatpush.msra.mxu0 0.0
    %1373 = vmatpush.msra.mxu0 0.0
    %1374 = vmatpush.msra.mxu0 0.0
    %1375 = vmatpush.msra.mxu0 0.0
    %1376 = vmatpush.msra.mxu0 0.0
    %1377 = vmatpush.msra.mxu0 %v1357
    %1378 = vmatpush.msra.mxu0 %v1355
    %1379 = vmatmul.f32.gmra.mxu0 %v1361
    %v1380 = vpop.f32.mrf.mxu0
    %v1381 = vadd.f32 0.0, %v1380
    %1382 = vdwg.mxu0
    %1383 = vrot.lane.b32.xlu0 %v914, 104
    %v1384 = vpop.permute.xlu0 %1383
    %1385 = vrot.lane.b32.xlu0 %v946, 104
    %v1386 = vpop.permute.xlu0 %1385
    %1387 = vrot.lane.b32.xlu0 %v949, 104
    %v1388 = vpop.permute.xlu0 %1387
    %v1389 = vsel %vm207, %v1384, 0
    %v1391 = vsel %vm207, %v1386, 0
    %v1393 = vsel %vm207, %v1388, 0
    %1395 = vmatpush.xpose.msra.mxu0 0.0
    %1396 = vmatpush.xpose.msra.mxu0 0.0
    %1397 = vmatpush.xpose.msra.mxu0 0.0
    %1398 = vmatpush.xpose.msra.mxu0 0.0
    %1399 = vmatpush.xpose.msra.mxu0 0.0
    %1400 = vmatpush.xpose.msra.mxu0 0.0
    %1401 = vmatpush.xpose.msra.mxu0 0.0
    %1402 = vmatpush.xpose.msra.mxu0 0.0
    %1403 = vmatpush.xpose.msra.mxu0 0.0
    %1404 = vmatpush.xpose.msra.mxu0 0.0
    %1405 = vmatpush.xpose.msra.mxu0 0.0
    %1406 = vmatpush.xpose.msra.mxu0 0.0
    %1407 = vmatpush.xpose.msra.mxu0 0.0
    %1408 = vmatpush.xpose.msra.mxu0 0.0
    %1409 = vmatpush.xpose.msra.mxu0 %v1393
    %1410 = vmatpush.xpose.msra.mxu0 %v1391
    %1411 = vmatmul.f32.gmra.mxu0 %v1389
    %v1412 = vpop.f32.mrf.mxu0
    %v1413 = vadd.f32 0.0, %v1412
    %1414 = vdwg.mxu0
    %1415 = vrot.lane.b32.xlu0 %v915, 104
    %v1416 = vpop.permute.xlu0 %1415
    %1417 = vrot.lane.b32.xlu0 %v952, 104
    %v1418 = vpop.permute.xlu0 %1417
    %1419 = vrot.lane.b32.xlu0 %v955, 104
    %v1420 = vpop.permute.xlu0 %1419
    %v1421 = vsel %vm207, %v1416, 0
    %v1423 = vsel %vm207, %v1418, 0
    %v1425 = vsel %vm207, %v1420, 0
    %1427 = vmatpush.xpose.msra.mxu0 0.0
    %1428 = vmatpush.xpose.msra.mxu0 0.0
    %1429 = vmatpush.xpose.msra.mxu0 0.0
    %1430 = vmatpush.xpose.msra.mxu0 0.0
    %1431 = vmatpush.xpose.msra.mxu0 0.0
    %1432 = vmatpush.xpose.msra.mxu0 0.0
    %1433 = vmatpush.xpose.msra.mxu0 0.0
    %1434 = vmatpush.xpose.msra.mxu0 0.0
    %1435 = vmatpush.xpose.msra.mxu0 0.0
    %1436 = vmatpush.xpose.msra.mxu0 0.0
    %1437 = vmatpush.xpose.msra.mxu0 0.0
    %1438 = vmatpush.xpose.msra.mxu0 0.0
    %1439 = vmatpush.xpose.msra.mxu0 0.0
    %1440 = vmatpush.xpose.msra.mxu0 0.0
    %1441 = vmatpush.xpose.msra.mxu0 %v1425
    %1442 = vmatpush.xpose.msra.mxu0 %v1423
    %1443 = vmatmul.f32.gmra.mxu0 %v1421
    %v1444 = vpop.f32.mrf.mxu0
    %v1445 = vadd.f32 0.0, %v1444
    %1446 = vdwg.mxu0
    %v1447 = vsel %vm263, %v1413, -inf
    %1448 = vmax.xlane.f32.xlu0 %v1447
    %v1449 = vpop.xlane.xlu0 %1448
    %v1450 = vsel %vm263, %v1445, -inf
    %1451 = vmax.xlane.f32.xlu0 %v1450
    %v1452 = vpop.xlane.xlu0 %1451
    %v1453 = vsub.f32 %v1413, %v1449
    %v1454 = vsub.f32 %v1445, %v1452
    %v1455 = vmul.f32 %v1453, 1.442695
    %v1456 = vpow.pop %v1455
    %v1457 = vmul.f32 %v1454, 1.442695
    %v1458 = vpow.pop %v1457
    %v1459 = vsel %vm263, %v1456, 0.0
    %1460 = vadd.xlane.f32.xlu0 %v1459
    %v1461 = vpop.xlane.xlu0 %1460
    %v1462 = vsel %vm263, %v1458, 0.0
    %1463 = vadd.xlane.f32.xlu0 %v1462
    %v1464 = vpop.xlane.xlu0 %1463
    %v1465 = vrcp.pop %v1461
    %v1466 = vrcp.pop %v1464
    %v1467 = vmul.f32 %v1456, %v1465
    %v1468 = vmul.f32 %v1458, %v1466
    %1469 = vrot.lane.b32.xlu0 %v946, 72
    %v1470 = vpop.permute.xlu0 %1469
    %1471 = vrot.lane.b32.xlu0 %v949, 72
    %v1472 = vpop.permute.xlu0 %1471
    %v1476 = vsel %vm263, %v1467, 0
    %1478 = vmatpush.msra.mxu0 0.0
    %1479 = vmatpush.msra.mxu0 0.0
    %1480 = vmatpush.msra.mxu0 0.0
    %1481 = vmatpush.msra.mxu0 0.0
    %1482 = vmatpush.msra.mxu0 0.0
    %1483 = vmatpush.msra.mxu0 0.0
    %1484 = vmatpush.msra.mxu0 0.0
    %1485 = vmatpush.msra.mxu0 0.0
    %1486 = vmatpush.msra.mxu0 0.0
    %1487 = vmatpush.msra.mxu0 0.0
    %1488 = vmatpush.msra.mxu0 0.0
    %1489 = vmatpush.msra.mxu0 0.0
    %1490 = vmatpush.msra.mxu0 0.0
    %1491 = vmatpush.msra.mxu0 0.0
    %1492 = vmatpush.msra.mxu0 %v1472
    %1493 = vmatpush.msra.mxu0 %v1470
    %1494 = vmatmul.f32.gmra.mxu0 %v1476
    %v1495 = vpop.f32.mrf.mxu0
    %v1496 = vadd.f32 0.0, %v1495
    %1497 = vdwg.mxu0
    %1498 = vrot.lane.b32.xlu0 %v952, 72
    %v1499 = vpop.permute.xlu0 %1498
    %1500 = vrot.lane.b32.xlu0 %v955, 72
    %v1501 = vpop.permute.xlu0 %1500
    %v1505 = vsel %vm263, %v1468, 0
    %1507 = vmatpush.msra.mxu0 0.0
    %1508 = vmatpush.msra.mxu0 0.0
    %1509 = vmatpush.msra.mxu0 0.0
    %1510 = vmatpush.msra.mxu0 0.0
    %1511 = vmatpush.msra.mxu0 0.0
    %1512 = vmatpush.msra.mxu0 0.0
    %1513 = vmatpush.msra.mxu0 0.0
    %1514 = vmatpush.msra.mxu0 0.0
    %1515 = vmatpush.msra.mxu0 0.0
    %1516 = vmatpush.msra.mxu0 0.0
    %1517 = vmatpush.msra.mxu0 0.0
    %1518 = vmatpush.msra.mxu0 0.0
    %1519 = vmatpush.msra.mxu0 0.0
    %1520 = vmatpush.msra.mxu0 0.0
    %1521 = vmatpush.msra.mxu0 %v1501
    %1522 = vmatpush.msra.mxu0 %v1499
    %1523 = vmatmul.f32.gmra.mxu0 %v1505
    %v1524 = vpop.f32.mrf.mxu0
    %v1525 = vadd.f32 0.0, %v1524
    %1526 = vdwg.mxu0
    %1529 = vrot.lane.b32.xlu0 %v1208, 8
    %v1530 = vpop.permute.xlu0 %1529
    %1531 = vrot.lane.b32.xlu0 %v1237, 8
    %v1532 = vpop.permute.xlu0 %1531
    %1537 = vrot.lane.b32.xlu0 %v1352, 16
    %v1538 = vpop.permute.xlu0 %1537
    %1539 = vrot.lane.b32.xlu0 %v1381, 16
    %v1540 = vpop.permute.xlu0 %1539
    %1545 = vrot.lane.b32.xlu0 %v1496, 24
    %v1546 = vpop.permute.xlu0 %1545
    %1547 = vrot.lane.b32.xlu0 %v1525, 24
    %v1548 = vpop.permute.xlu0 %1547
    %v1551 = vsel %vm207, %v1064, %v1530
    %v1552 = vsel %vm207, %v1093, %v1532
    %v1553 = vsel %vm263, %v1551, %v1538
    %v1554 = vsel %vm263, %v1552, %v1540
    %v1555 = vsel %vm792, %v1553, %v1546
    %v1556 = vsel %vm792, %v1554, %v1548
    %v1558 = vsel %vm165, %v1555, 0
    %v1561 = vsel %vm165, %v1556, 0
    %1563 = vmatpush.msra.mxu0 0.0
    %1564 = vmatpush.msra.mxu0 0.0
    %1565 = vmatpush.msra.mxu0 0.0
    %1566 = vmatpush.msra.mxu0 0.0
    %1567 = vmatpush.msra.mxu0 0.0
    %1568 = vmatpush.msra.mxu0 0.0
    %1569 = vmatpush.msra.mxu0 0.0
    %1570 = vmatpush.msra.mxu0 0.0
    %1571 = vmatpush.msra.mxu0 0.0
    %1572 = vmatpush.msra.mxu0 0.0
    %1573 = vmatpush.msra.mxu0 0.0
    %1574 = vmatpush.msra.mxu0 0.0
    %1575 = vmatpush.msra.mxu0 %v146
    %1576 = vmatpush.msra.mxu0 %v145
    %1577 = vmatpush.msra.mxu0 %v144
    %1578 = vmatpush.msra.mxu0 %v143
    %1579 = vmatmul.f32.gmra.mxu0 %v1558
    %v1580 = vpop.f32.mrf.mxu0
    %v1581 = vadd.f32 %v819, %v1580
    %1582 = vmatmul.f32.gmra.mxu0 %v1561
    %v1583 = vpop.f32.mrf.mxu0
    %v1584 = vadd.f32 %v822, %v1583
    %1585 = vdwg.mxu0
    %v1586 = vsel %vm165, %v1581, 0.0
    %1587 = vadd.xlane.f32.xlu0 %v1586
    %v1588 = vpop.xlane.xlu0 %1587
    %v1589 = vsel %vm165, %v1584, 0.0
    %1590 = vadd.xlane.f32.xlu0 %v1589
    %v1591 = vpop.xlane.xlu0 %1590
    %v1592 = vmul.f32 %v1588, %v836
    %v1593 = vmul.f32 %v1591, %v836
    %v1594 = vsub.f32 %v1581, %v1592
    %v1595 = vsub.f32 %v1584, %v1593
    %v1596 = vmul.f32 %v1594, %v1594
    %v1597 = vmul.f32 %v1595, %v1595
    %v1598 = vsel %vm165, %v1596, 0.0
    %1599 = vadd.xlane.f32.xlu0 %v1598
    %v1600 = vpop.xlane.xlu0 %1599
    %v1601 = vsel %vm165, %v1597, 0.0
    %1602 = vadd.xlane.f32.xlu0 %v1601
    %v1603 = vpop.xlane.xlu0 %1602
    %v1604 = vmul.f32 %v1600, %v836
    %v1605 = vmul.f32 %v1603, %v836
    %v1606 = vadd.f32 %v1604, 1e-06
    %v1607 = vadd.f32 %v1605, 1e-06
    %v1608 = vrsqrt.pop %v1606
    %v1609 = vmul.f32 %v1608, %v1606
    %v1610 = vmul.f32 %v1609, %v1608
    %v1611 = vmul.f32 0.5, %v1610
    %v1612 = vsub.f32 1.5, %v1611
    %v1613 = vmul.f32 %v1608, %v1612
    %vm1614 = vweird.f32 %v1606
    %vm1615 = vweird.f32 %v1608
    %vm1616 = vmor %vm1614, %vm1615
    %v1617 = vsel %vm1616, %v1608, %v1613
    %v1618 = vrsqrt.pop %v1607
    %v1619 = vmul.f32 %v1618, %v1607
    %v1620 = vmul.f32 %v1619, %v1618
    %v1621 = vmul.f32 0.5, %v1620
    %v1622 = vsub.f32 1.5, %v1621
    %v1623 = vmul.f32 %v1618, %v1622
    %vm1624 = vweird.f32 %v1607
    %vm1625 = vweird.f32 %v1618
    %vm1626 = vmor %vm1624, %vm1625
    %v1627 = vsel %vm1626, %v1618, %v1623
    %v1628 = vmul.f32 %v1594, %v1617
    %v1629 = vmul.f32 %v1595, %v1627
    %v1630 = vmul.f32 %v1628, %v876
    %v1631 = vmul.f32 %v1629, %v876
    %v1632 = vadd.f32 %v1630, %v881
    %v1633 = vadd.f32 %v1631, %v881
    %v1635 = vperm.slane %v153, 0
    %v1638 = vsel %vm165, %v1632, 0
    %v1641 = vsel %vm165, %v1633, 0
    %1643 = vmatpush.msra.mxu0 0.0
    %1644 = vmatpush.msra.mxu0 0.0
    %1645 = vmatpush.msra.mxu0 0.0
    %1646 = vmatpush.msra.mxu0 0.0
    %1647 = vmatpush.msra.mxu0 0.0
    %1648 = vmatpush.msra.mxu0 0.0
    %1649 = vmatpush.msra.mxu0 0.0
    %1650 = vmatpush.msra.mxu0 0.0
    %1651 = vmatpush.msra.mxu0 0.0
    %1652 = vmatpush.msra.mxu0 0.0
    %1653 = vmatpush.msra.mxu0 0.0
    %1654 = vmatpush.msra.mxu0 0.0
    %1655 = vmatpush.msra.mxu0 %v152
    %1656 = vmatpush.msra.mxu0 %v151
    %1657 = vmatpush.msra.mxu0 %v150
    %1658 = vmatpush.msra.mxu0 %v149
    %1659 = vmatmul.f32.gmra.mxu0 %v1638
    %v1660 = vpop.f32.mrf.mxu0
    %v1661 = vadd.f32 %v1635, %v1660
    %1662 = vmatmul.f32.gmra.mxu0 %v1641
    %v1663 = vpop.f32.mrf.mxu0
    %v1664 = vadd.f32 %v1635, %v1663
    %1665 = vdwg.mxu0
    %v1666 = vmax.f32 %v1661, 0.0
    %v1667 = vmax.f32 %v1664, 0.0
    %v1669 = vperm.slane %v162, 0
    %vm1671 = vcmask 523264
    %v1673 = vsel %vm1671, %v1666, 0
    %v1676 = vsel %vm1671, %v1667, 0
    %1678 = vmatpush.msra.mxu0 0.0
    %1679 = vmatpush.msra.mxu0 0.0
    %1680 = vmatpush.msra.mxu0 0.0
    %1681 = vmatpush.msra.mxu0 0.0
    %1682 = vmatpush.msra.mxu0 0.0
    %1683 = vmatpush.msra.mxu0 0.0
    %1684 = vmatpush.msra.mxu0 0.0
    %1685 = vmatpush.msra.mxu0 0.0
    %1686 = vmatpush.msra.mxu0 %v161
    %1687 = vmatpush.msra.mxu0 %v160
    %1688 = vmatpush.msra.mxu0 %v159
    %1689 = vmatpush.msra.mxu0 %v158
    %1690 = vmatpush.msra.mxu0 %v157
    %1691 = vmatpush.msra.mxu0 %v156
    %1692 = vmatpush.msra.mxu0 %v155
    %1693 = vmatpush.msra.mxu0 %v154
    %1694 = vmatmul.f32.gmra.mxu0 %v1673
    %v1695 = vpop.f32.mrf.mxu0
    %v1696 = vadd.f32 %v1669, %v1695
    %1697 = vmatmul.f32.gmra.mxu0 %v1676
    %v1698 = vpop.f32.mrf.mxu0
    %v1699 = vadd.f32 %v1669, %v1698
    %1700 = vdwg.mxu0
    %v1701 = vadd.f32 %v1696, %v1632
    %v1702 = vadd.f32 %v1699, %v1633
    %v1703 = vsel %vm165, %v1701, 0.0
    %1704 = vadd.xlane.f32.xlu0 %v1703
    %v1705 = vpop.xlane.xlu0 %1704
    %v1706 = vsel %vm165, %v1702, 0.0
    %1707 = vadd.xlane.f32.xlu0 %v1706
    %v1708 = vpop.xlane.xlu0 %1707
    %v1709 = vmul.f32 %v1705, %v836
    %v1710 = vmul.f32 %v1708, %v836
    %v1711 = vsub.f32 %v1701, %v1709
    %v1712 = vsub.f32 %v1702, %v1710
    %v1713 = vmul.f32 %v1711, %v1711
    %v1714 = vmul.f32 %v1712, %v1712
    %v1715 = vsel %vm165, %v1713, 0.0
    %1716 = vadd.xlane.f32.xlu0 %v1715
    %v1717 = vpop.xlane.xlu0 %1716
    %v1718 = vsel %vm165, %v1714, 0.0
    %1719 = vadd.xlane.f32.xlu0 %v1718
    %v1720 = vpop.xlane.xlu0 %1719
    %v1721 = vmul.f32 %v1717, %v836
    %v1722 = vmul.f32 %v1720, %v836
    %v1723 = vadd.f32 %v1721, 1e-06
    %v1724 = vadd.f32 %v1722, 1e-06
    %v1725 = vrsqrt.pop %v1723
    %v1726 = vmul.f32 %v1725, %v1723
    %v1727 = vmul.f32 %v1726, %v1725
    %v1728 = vmul.f32 0.5, %v1727
    %v1729 = vsub.f32 1.5, %v1728
    %v1730 = vmul.f32 %v1725, %v1729
    %vm1731 = vweird.f32 %v1723
    %vm1732 = vweird.f32 %v1725
    %vm1733 = vmor %vm1731, %vm1732
    %v1734 = vsel %vm1733, %v1725, %v1730
    %v1735 = vrsqrt.pop %v1724
    %v1736 = vmul.f32 %v1735, %v1724
    %v1737 = vmul.f32 %v1736, %v1735
    %v1738 = vmul.f32 0.5, %v1737
    %v1739 = vsub.f32 1.5, %v1738
    %v1740 = vmul.f32 %v1735, %v1739
    %vm1741 = vweird.f32 %v1724
    %vm1742 = vweird.f32 %v1735
    %vm1743 = vmor %vm1741, %vm1742
    %v1744 = vsel %vm1743, %v1735, %v1740
    %v1745 = vmul.f32 %v1711, %v1734
    %v1746 = vmul.f32 %v1712, %v1744
    %v1748 = vperm.slane %v163, 0
    %v1750 = vmul.f32 %v1745, %v1748
    %v1751 = vmul.f32 %v1746, %v1748
    %v1753 = vperm.slane %v164, 0
    %v1755 = vadd.f32 %v1750, %v1753
    %v1756 = vadd.f32 %v1751, %v1753
    %1757 = vst.msk [vmem:[#allocation11] sm:$0xff] %vm165, %v1755
    %1758 = vst.msk [vmem:[#allocation11 + $0x8] sm:$0xff] %vm165, %v1756
    // Predicated region
    $region82: #{transformer4_forward.1} parent=1 // pred_check
      _
    $region83: #{transformer4_forward.1} parent=1 // pred_check_branch
      %1760 = sbr.rel (0) target = $region85
    $region84: #{transformer4_forward.1} parent=1 // pred_region
      %1762 = vsyncadd [#allocation4], 0
      %s1763 = sshll.u32 [#allocation11], 4
      %s1764 = int_to_ptr.vmem [resolvable:$true] %s1763
      %s1765 = sshll.u32 %s15, 4
      %s1766 = int_to_ptr.hbm [resolvable:$true] %s1765
      %1771 = dma.vmem_to_hbm [thread:$0]  %s1764, 256, %s1766, [#allocation4], 128, 128, 8
    $region85: #{transformer4_forward.1} parent=1 // pred_fallthru
      _
    // Predicated region
    $region86: #{transformer4_forward.1} parent=1 // pred_check
      _
    $region87: #{transformer4_forward.1} parent=1 // pred_check_branch
      %1773 = sbr.rel (0) target = $region89
    $region88: #{transformer4_forward.1} parent=1 // pred_region
      %1775 = dma.done [#allocation4], 256
    $region89: #{transformer4_forward.1} parent=1 // pred_fallthru
      _
    %1776 = vsyncpa [#allocation3], 1
    %1777 = vsyncpa [#allocation6], 1
    %1778 = vsyncpa [#allocation9], 1
    %1779 = vsyncpa [#allocation4], 1

</llo_original>
